<compile_context>
chip_gen: v6e
topology: v6e:2x2x1
jax: 0.10.0
libtpu: 0.0.40
codegen_flags: <defaults>
</compile_context>

<pallas_src>
import math

import jax
import jax.numpy as jnp
from jax.experimental import pallas as pl
from jax.experimental.pallas import tpu as pltpu

_LN_EPS = 1e-5                   # nn.LayerNorm default


def _vmem_limit_bytes():
    # Generation-aware scoped-VMEM limit: ~80% of physical
    # (v5e/v6e 128 MiB -> ~102 MiB, v7x 64 MiB -> ~51 MiB), fallback 48 MiB.
    try:
        cap = pltpu.get_tpu_info().vmem_capacity_bytes
        return max(32 * 1024 * 1024, int(cap * 0.80))
    except Exception:
        return 48 * 1024 * 1024


_VMEM_LIMIT = _vmem_limit_bytes()
_ROW_TILE_CAP = 1024 if _VMEM_LIMIT >= 96 * 1024 * 1024 else 512
_Q_TILE_CAP = 512


def _row_tile(m, cap):
    return m if m <= cap else cap


# --------------------------------------------------------------------------
# Multi-head attention: grid (B, q_tiles, heads), fused residual/LN epilogue
# --------------------------------------------------------------------------
def _make_mha_kernel(inv_temp, *, has_mask, epilogue, compute_dtype):
    cast = (lambda a: a.astype(compute_dtype)) if compute_dtype is not None \
        else (lambda a: a)

    def kernel(*refs):
        it = iter(refs)
        q_ref = next(it)                       # (1, tq, D)
        kv_ref = next(it)                      # (1, Lk, D)
        mask_ref = next(it) if has_mask else None
        wq_ref = next(it)                      # (1, D, d_qk)
        wk_ref = next(it)                      # (1, D, d_qk)
        wv_ref = next(it)                      # (1, D, d_v)
        wo_ref = next(it)                      # (1, d_v, D)
        res_ref = next(it) if epilogue == "add" else None
        if epilogue == "add_ln":
            g_ref = next(it)                   # (1, D)
            beta_ref = next(it)                # (1, D)
        out_ref = next(it)                     # (1, tq, D)
        attn_ref = next(it)                    # (1, 1, tq, Lk)
        acc_ref = next(it)                     # (tq, D) f32 scratch

        h = pl.program_id(2)

        @pl.when(h == 0)
        def _():
            acc_ref[...] = jnp.zeros_like(acc_ref)

        x_q = q_ref[0]                         # (tq, D)
        x_kv = kv_ref[0]                       # (Lk, D)

        # per-head projections (contraction K = D on the MXU)
        q = jnp.dot(cast(x_q), cast(wq_ref[0]), preferred_element_type=jnp.float32)
        k = jnp.dot(cast(x_kv), cast(wk_ref[0]), preferred_element_type=jnp.float32)
        v = jnp.dot(cast(x_kv), cast(wv_ref[0]), preferred_element_type=jnp.float32)

        # scores = (q / temperature) @ k^T   -> (tq, Lk)
        s = jax.lax.dot_general(cast(q * inv_temp), cast(k),
                                (((1,), (1,)), ((), ())),
                                preferred_element_type=jnp.float32)
        if has_mask:
            s = jnp.where(mask_ref[0] == 0, -1e9, s)
        s = s - jnp.max(s, axis=-1, keepdims=True)
        e = jnp.exp(s)
        p = e / jnp.sum(e, axis=-1, keepdims=True)          # softmax (f32)
        attn_ref[0, 0] = p.astype(attn_ref.dtype)           # attn dropout p=0

        ctx = jnp.dot(cast(p), cast(v), preferred_element_type=jnp.float32)
        # per-head slice of the output projection (== concat(ctx) @ wo)
        acc_ref[...] += jnp.dot(cast(ctx), cast(wo_ref[0]),
                                preferred_element_type=jnp.float32)

        @pl.when(h == pl.num_programs(2) - 1)
        def _():
            y = acc_ref[...]                                 # dropout = identity (eval)
            if epilogue == "add":                            # pre-norm: + residual
                y = y + res_ref[0].astype(jnp.float32)
            elif epilogue == "add_ln":                       # post-norm: LN(attn + q_in)
                y = y + q_ref[0].astype(jnp.float32)
                mu = jnp.mean(y, axis=-1, keepdims=True)
                yc = y - mu
                var = jnp.mean(yc * yc, axis=-1, keepdims=True)
                y = yc * jax.lax.rsqrt(var + _LN_EPS) * g_ref[...] + beta_ref[...]
            out_ref[0] = y.astype(out_ref.dtype)

    return kernel


def multi_head_attention(q_in, kv_in, mask, wq, wk, wv, wo, *, n_head, d_qk, d_v,
                         epilogue="none", residual=None, gamma=None, beta=None,
                         compute_dtype=None, attn_dtype=jnp.float32):
    """q_in: (B, Lq, D); kv_in: (B, Lk, D) used for both keys and values.
    epilogue: "none" | "add" (out = mha + residual) | "add_ln" (out = LN(mha + q_in)).
    Returns (out, attn_probs)."""
    B, Lq, D = q_in.shape
    Lk = kv_in.shape[1]
    inv_temp = 1.0 / math.sqrt(d_qk)
    if epilogue == "add":
        assert residual is not None
    if epilogue == "add_ln":
        assert gamma is not None and beta is not None

    # Head-major weight layouts: each grid step fetches one head's weights as a
    # full-extent block (no sub-128 column blocking on the lane dim).
    wq_r = wq.reshape(D, n_head, d_qk).transpose(1, 0, 2)    # (H, D, d_qk)
    wk_r = wk.reshape(D, n_head, d_qk).transpose(1, 0, 2)    # (H, D, d_qk)
    wv_r = wv.reshape(D, n_head, d_v).transpose(1, 0, 2)     # (H, D, d_v)
    wo_r = wo.reshape(n_head, d_v, D)                        # (H, d_v, D)

    tq = Lq if Lq <= _Q_TILE_CAP else _Q_TILE_CAP            # bound VMEM at long Lq
    n_qt = pl.cdiv(Lq, tq)

    # Mask: never broadcast to B copies in HBM; shared masks stay resident.
    has_mask = mask is not None
    inputs = [q_in, kv_in]
    in_specs = [
        pl.BlockSpec((1, tq, D), lambda b, i, h: (b, i, 0)),     # queries
        pl.BlockSpec((1, Lk, D), lambda b, i, h: (b, 0, 0)),     # keys/values source
    ]
    if has_mask:
        m = jnp.asarray(mask)
        if m.ndim == 4:                                          # (B|1, 1, Lq, Lk)
            m = m[:, 0]
        if m.ndim == 2:                                          # (Lq, Lk)
            m = m[None]
        m_b = B if (m.shape[0] == B and B > 1) else 1
        m = jnp.broadcast_to(m.astype(jnp.float32), (m_b, Lq, Lk))
        if m_b == 1:
            mask_spec = pl.BlockSpec((1, tq, Lk), lambda b, i, h: (0, i, 0))
        else:
            mask_spec = pl.BlockSpec((1, tq, Lk), lambda b, i, h: (b, i, 0))
        inputs.append(m)
        in_specs.append(mask_spec)

    inputs += [wq_r, wk_r, wv_r, wo_r]
    in_specs += [
        pl.BlockSpec((1, D, d_qk), lambda b, i, h: (h, 0, 0)),
        pl.BlockSpec((1, D, d_qk), lambda b, i, h: (h, 0, 0)),
        pl.BlockSpec((1, D, d_v), lambda b, i, h: (h, 0, 0)),
        pl.BlockSpec((1, d_v, D), lambda b, i, h: (h, 0, 0)),
    ]
    if epilogue == "add":
        inputs.append(residual)
        in_specs.append(pl.BlockSpec((1, tq, D), lambda b, i, h: (b, i, 0)))
    elif epilogue == "add_ln":
        inputs += [gamma.reshape(1, D), beta.reshape(1, D)]
        in_specs += [pl.BlockSpec((1, D), lambda b, i, h: (0, 0)),
                     pl.BlockSpec((1, D), lambda b, i, h: (0, 0))]

    kernel = _make_mha_kernel(inv_temp, has_mask=has_mask, epilogue=epilogue,
                              compute_dtype=compute_dtype)

    flops = 2 * B * n_head * (Lq * D * d_qk + Lk * D * (d_qk + d_v)
                              + Lq * Lk * (d_qk + d_v) + Lq * d_v * D)
    bytes_accessed = 4 * (q_in.size + kv_in.size + B * Lq * D
                          + B * n_head * Lq * Lk + wq.size + wk.size + wv.size + wo.size)
    cost = pl.CostEstimate(flops=int(flops),
                           transcendentals=int(B * n_head * Lq * Lk),
                           bytes_accessed=int(bytes_accessed))

    out, attn = pl.pallas_call(
        kernel,
        out_shape=(jax.ShapeDtypeStruct((B, Lq, D), q_in.dtype),
                   jax.ShapeDtypeStruct((B, n_head, Lq, Lk), attn_dtype)),
        grid_spec=pltpu.PrefetchScalarGridSpec(
            num_scalar_prefetch=0,
            grid=(B, n_qt, n_head),
            in_specs=in_specs,
            out_specs=(
                pl.BlockSpec((1, tq, D), lambda b, i, h: (b, i, 0)),
                pl.BlockSpec((1, 1, tq, Lk), lambda b, i, h: (b, h, i, 0)),
            ),
            scratch_shapes=[pltpu.VMEM((tq, D), jnp.float32)]),
        compiler_params=pltpu.CompilerParams(
            dimension_semantics=("parallel", "parallel", "arbitrary"),
            vmem_limit_bytes=_VMEM_LIMIT),
        cost_estimate=cost,
    )(*inputs)
    return out, attn


# --------------------------------------------------------------------------
# FeedForward: hidden-dim chunked, fused residual add (+ LayerNorm) epilogue
# --------------------------------------------------------------------------
def _make_ffn_kernel(*, prologue_ln, epilogue, compute_dtype):
    cast = (lambda a: a.astype(compute_dtype)) if compute_dtype is not None \
        else (lambda a: a)

    def kernel(x_ref, w1_ref, b1_ref, w2_ref, b2_ref, g_ref, beta_ref,
               o_ref, acc_ref, *maybe_xn):
        xn_ref = maybe_xn[0] if prologue_ln else None
        j = pl.program_id(1)

        @pl.when(j == 0)
        def _():
            acc_ref[...] = jnp.zeros_like(acc_ref)
            if prologue_ln:                       # fused ffn_norm (pre-norm path)
                x = x_ref[...].astype(jnp.float32)
                mu = jnp.mean(x, axis=-1, keepdims=True)
                xc = x - mu
                var = jnp.mean(xc * xc, axis=-1, keepdims=True)
                xn_ref[...] = (xc * jax.lax.rsqrt(var + _LN_EPS) * g_ref[...]
                               + beta_ref[...])

        xin = xn_ref[...] if prologue_ln else x_ref[...]
        hcol = jnp.dot(cast(xin), cast(w1_ref[...]),
                       preferred_element_type=jnp.float32) + b1_ref[...]
        hcol = jnp.maximum(hcol, 0.0)             # ReLU; dropout1 identity (eval)
        acc_ref[...] += jnp.dot(cast(hcol), cast(w2_ref[...]),
                                preferred_element_type=jnp.float32)

        @pl.when(j == pl.num_programs(1) - 1)
        def _():
            y = acc_ref[...] + b2_ref[...]        # dropout2 identity (eval)
            y = y + x_ref[...].astype(jnp.float32)   # fused residual add
            if epilogue == "add_ln":              # fused ffn_norm (post-norm path)
                mu = jnp.mean(y, axis=-1, keepdims=True)
                yc = y - mu
                var = jnp.mean(yc * yc, axis=-1, keepdims=True)
                y = yc * jax.lax.rsqrt(var + _LN_EPS) * g_ref[...] + beta_ref[...]
            o_ref[...] = y.astype(o_ref.dtype)

    return kernel


def feed_forward_block(x, w1, b1, w2, b2, gamma, beta, *, prologue_ln, epilogue,
                       compute_dtype=None):
    """post-norm: prologue_ln=False, epilogue='add_ln'  ->  LN(x + FFN(x))
       pre-norm : prologue_ln=True,  epilogue='add'     ->  x + FFN(LN(x))"""
    shp = x.shape
    D = shp[-1]
    Dh = w1.shape[1]
    M = x.size // D
    x2 = x.reshape(M, D)

    tm = _row_tile(M, _ROW_TILE_CAP)
    n_rt = pl.cdiv(M, tm)

    # hidden-dim chunking (K/N reduction axis): w1/w2 and the hidden activation
    # never need to be fully resident in VMEM at production widths.
    tdh = Dh
    if Dh > 2048:
        for c in (2048, 1024, 512, 256, 128):
            if Dh % c == 0:
                tdh = c
                break
    n_ct = Dh // tdh

    kernel = _make_ffn_kernel(prologue_ln=prologue_ln, epilogue=epilogue,
                              compute_dtype=compute_dtype)
    scratch = [pltpu.VMEM((tm, D), jnp.float32)]
    if prologue_ln:
        scratch.append(pltpu.VMEM((tm, D), jnp.float32))

    cost = pl.CostEstimate(
        flops=int(4 * M * D * Dh), transcendentals=0,
        bytes_accessed=int(4 * (2 * M * D + 2 * D * Dh + D + Dh)))

    out = pl.pallas_call(
        kernel,
        out_shape=jax.ShapeDtypeStruct((M, D), x.dtype),
        grid_spec=pltpu.PrefetchScalarGridSpec(
            num_scalar_prefetch=0,
            grid=(n_rt, n_ct),
            in_specs=[
                pl.BlockSpec((tm, D), lambda i, j: (i, 0)),     # x (resident over j)
                pl.BlockSpec((D, tdh), lambda i, j: (0, j)),    # w1 chunk
                pl.BlockSpec((1, tdh), lambda i, j: (0, j)),    # b1 chunk
                pl.BlockSpec((tdh, D), lambda i, j: (j, 0)),    # w2 chunk
                pl.BlockSpec((1, D), lambda i, j: (0, 0)),      # b2
                pl.BlockSpec((1, D), lambda i, j: (0, 0)),      # LN gamma
                pl.BlockSpec((1, D), lambda i, j: (0, 0)),      # LN beta
            ],
            out_specs=pl.BlockSpec((tm, D), lambda i, j: (i, 0)),
            scratch_shapes=scratch),
        compiler_params=pltpu.CompilerParams(
            dimension_semantics=("parallel", "arbitrary"),
            vmem_limit_bytes=_VMEM_LIMIT),
        cost_estimate=cost,
    )(x2, w1, b1.reshape(1, Dh), w2, b2.reshape(1, D),
      gamma.reshape(1, D), beta.reshape(1, D))
    return out.reshape(shp)


# --------------------------------------------------------------------------
# Standalone LayerNorm (pre-norm attention inputs only)
# --------------------------------------------------------------------------
def _ln_kernel(x_ref, g_ref, beta_ref, o_ref):
    x = x_ref[...].astype(jnp.float32)
    mu = jnp.mean(x, axis=-1, keepdims=True)
    xc = x - mu
    var = jnp.mean(xc * xc, axis=-1, keepdims=True)
    o_ref[...] = (xc * jax.lax.rsqrt(var + _LN_EPS) * g_ref[...]
                  + beta_ref[...]).astype(o_ref.dtype)


def layer_norm(x, gamma, beta):
    shp = x.shape
    D = shp[-1]
    M = x.size // D
    tm = _row_tile(M, _ROW_TILE_CAP)
    out = pl.pallas_call(
        _ln_kernel,
        out_shape=jax.ShapeDtypeStruct((M, D), x.dtype),
        grid_spec=pltpu.PrefetchScalarGridSpec(
            num_scalar_prefetch=0,
            grid=(pl.cdiv(M, tm),),
            in_specs=[pl.BlockSpec((tm, D), lambda i: (i, 0)),
                      pl.BlockSpec((1, D), lambda i: (0, 0)),
                      pl.BlockSpec((1, D), lambda i: (0, 0))],
            out_specs=pl.BlockSpec((tm, D), lambda i: (i, 0))),
        compiler_params=pltpu.CompilerParams(
            dimension_semantics=("parallel",),
            vmem_limit_bytes=_VMEM_LIMIT),
    )(x.reshape(M, D), gamma.reshape(1, D), beta.reshape(1, D))
    return out.reshape(shp)


# --------------------------------------------------------------------------
# DecoderLayer forward (eval mode), composed from the fused kernels above
# --------------------------------------------------------------------------
def decoder_layer(p, dec_input, enc_output, slf_attn_mask=None,
                  dec_enc_attn_mask=None, *, n_head, d_qk, d_v, pre_norm=False,
                  compute_dtype=None):
    def mha(q, kv, m, pre, **kw):
        return multi_head_attention(
            q, kv, m, p[pre + "_wq"], p[pre + "_wk"], p[pre + "_wv"], p[pre + "_wo"],
            n_head=n_head, d_qk=d_qk, d_v=d_v, compute_dtype=compute_dtype, **kw)

    if pre_norm:
        t = layer_norm(dec_input, p["slf_ln_g"], p["slf_ln_b"])
        x, slf_attn = mha(t, t, slf_attn_mask, "slf",
                          epilogue="add", residual=dec_input)      # dec_input + attn
        t2 = layer_norm(x, p["enc_ln_g"], p["enc_ln_b"])
        x2, enc_attn = mha(t2, enc_output, dec_enc_attn_mask, "enc",
                           epilogue="add", residual=x)             # x + attn
        dec_out = feed_forward_block(
            x2, p["ffn_w1"], p["ffn_b1"], p["ffn_w2"], p["ffn_b2"],
            p["ffn_ln_g"], p["ffn_ln_b"],
            prologue_ln=True, epilogue="add",
            compute_dtype=compute_dtype)                           # x2 + FFN(LN(x2))
    else:
        x, slf_attn = mha(dec_input, dec_input, slf_attn_mask, "slf",
                          epilogue="add_ln",
                          gamma=p["slf_ln_g"], beta=p["slf_ln_b"])  # LN(attn + dec_in)
        x2, enc_attn = mha(x, enc_output, dec_enc_attn_mask, "enc",
                           epilogue="add_ln",
                           gamma=p["enc_ln_g"], beta=p["enc_ln_b"])  # LN(attn + x)
        dec_out = feed_forward_block(
            x2, p["ffn_w1"], p["ffn_b1"], p["ffn_w2"], p["ffn_b2"],
            p["ffn_ln_g"], p["ffn_ln_b"],
            prologue_ln=False, epilogue="add_ln",
            compute_dtype=compute_dtype)                           # LN(x2 + FFN(x2))
    return dec_out, slf_attn, enc_attn


# --------------------------------------------------------------------------
# Pure-JAX reference (eval-mode PyTorch semantics)
# --------------------------------------------------------------------------
def _ref_ln(x, g, b):
    mu = x.mean(-1, keepdims=True)
    var = ((x - mu) ** 2).mean(-1, keepdims=True)
    return (x - mu) * jax.lax.rsqrt(var + _LN_EPS) * g + b


def _ref_ffn(x, w1, b1, w2, b2):
    return jnp.maximum(x @ w1 + b1, 0.0) @ w2 + b2


def _ref_mha(q_in, kv_in, mask, wq, wk, wv, wo, n_head, d_qk, d_v):
    B, Lq, _ = q_in.shape
    Lk = kv_in.shape[1]
    q = (q_in @ wq).reshape(B, Lq, n_head, d_qk).transpose(0, 2, 1, 3)
    k = (kv_in @ wk).reshape(B, Lk, n_head, d_qk).transpose(0, 2, 1, 3)
    v = (kv_in @ wv).reshape(B, Lk, n_head, d_v).transpose(0, 2, 1, 3)
    s = jnp.einsum("bhqd,bhkd->bhqk", q / math.sqrt(d_qk), k)
    if mask is not None:
        m = jnp.broadcast_to(mask.astype(jnp.float32), (B, Lq, Lk))[:, None]
        s = jnp.where(m == 0, -1e9, s)
    prob = jax.nn.softmax(s, axis=-1)
    o = jnp.einsum("bhqk,bhkd->bhqd", prob, v)
    o = o.transpose(0, 2, 1, 3).reshape(B, Lq, n_head * d_v)
    return o @ wo, prob


def _ref_decoder_layer(p, dec_input, enc_output, slf_mask, enc_mask,
                       *, n_head, d_qk, d_v, pre_norm):
    mha = lambda q, kv, m, pre: _ref_mha(
        q, kv, m, p[pre + "_wq"], p[pre + "_wk"], p[pre + "_wv"], p[pre + "_wo"],
        n_head, d_qk, d_v)
    if pre_norm:
        t = _ref_ln(dec_input, p["slf_ln_g"], p["slf_ln_b"])
        a, slf = mha(t, t, slf_mask, "slf")
        x = a + dec_input
        t = _ref_ln(x, p["enc_ln_g"], p["enc_ln_b"])
        a2, enc = mha(t, enc_output, enc_mask, "enc")
        x = x + a2
        t = _ref_ln(x, p["ffn_ln_g"], p["ffn_ln_b"])
        out = x + _ref_ffn(t, p["ffn_w1"], p["ffn_b1"], p["ffn_w2"], p["ffn_b2"])
    else:
        a, slf = mha(dec_input, dec_input, slf_mask, "slf")
        x = _ref_ln(a + dec_input, p["slf_ln_g"], p["slf_ln_b"])
        a2, enc = mha(x, enc_output, enc_mask, "enc")
        x = _ref_ln(x + a2, p["enc_ln_g"], p["enc_ln_b"])
        out = _ref_ln(x + _ref_ffn(x, p["ffn_w1"], p["ffn_b1"],
                                   p["ffn_w2"], p["ffn_b2"]),
                      p["ffn_ln_g"], p["ffn_ln_b"])
    return out, slf, enc


if __name__ == "__main__":
    B, Lq, Lk = 2, 8, 16
    d_input, d_inner = 32, 64
    n_head, d_qk, d_v = 4, 8, 8

    key = jax.random.PRNGKey(0)
    keys = jax.random.split(key, 20)
    ki = iter(keys)

    def lin(k, shape, fan_in):
        bnd = 1.0 / math.sqrt(fan_in)
        return jax.random.uniform(k, shape, jnp.float32, -bnd, bnd)

    dec_input = jax.random.normal(next(ki), (B, Lq, d_input), jnp.float32)
    enc_output = jax.random.normal(next(ki), (B, Lk, d_input), jnp.float32)

    params = {
        "slf_wq": lin(next(ki), (d_input, n_head * d_qk), d_input),
        "slf_wk": lin(next(ki), (d_input, n_head * d_qk), d_input),
        "slf_wv": lin(next(ki), (d_input, n_head * d_v), d_input),
        "slf_wo": lin(next(ki), (n_head * d_v, d_input), n_head * d_v),
        "enc_wq": lin(next(ki), (d_input, n_head * d_qk), d_input),
        "enc_wk": lin(next(ki), (d_input, n_head * d_qk), d_input),
        "enc_wv": lin(next(ki), (d_input, n_head * d_v), d_input),
        "enc_wo": lin(next(ki), (n_head * d_v, d_input), n_head * d_v),
        "ffn_w1": lin(next(ki), (d_input, d_inner), d_input),
        "ffn_b1": lin(next(ki), (d_inner,), d_input),
        "ffn_w2": lin(next(ki), (d_inner, d_input), d_inner),
        "ffn_b2": lin(next(ki), (d_input,), d_inner),
        "slf_ln_g": 1.0 + 0.1 * jax.random.normal(next(ki), (d_input,), jnp.float32),
        "slf_ln_b": 0.1 * jax.random.normal(next(ki), (d_input,), jnp.float32),
        "enc_ln_g": 1.0 + 0.1 * jax.random.normal(next(ki), (d_input,), jnp.float32),
        "enc_ln_b": 0.1 * jax.random.normal(next(ki), (d_input,), jnp.float32),
        "ffn_ln_g": 1.0 + 0.1 * jax.random.normal(next(ki), (d_input,), jnp.float32),
        "ffn_ln_b": 0.1 * jax.random.normal(next(ki), (d_input,), jnp.float32),
    }

    slf_mask = jnp.tril(jnp.ones((Lq, Lq), jnp.float32))   # causal self-attn mask
    enc_mask = None                                        # full cross-attn

    # f32 path: exact match vs reference for post-norm (default) and pre-norm.
    for pre_norm in (False, True):
        dec_out, slf_attn, enc_attn = decoder_layer(
            params, dec_input, enc_output, slf_mask, enc_mask,
            n_head=n_head, d_qk=d_qk, d_v=d_v, pre_norm=pre_norm)
        dec_out = jax.block_until_ready(dec_out)

        ref_out, ref_slf, ref_enc = _ref_decoder_layer(
            params, dec_input, enc_output, slf_mask, enc_mask,
            n_head=n_head, d_qk=d_qk, d_v=d_v, pre_norm=pre_norm)

        assert dec_out.shape == (B, Lq, d_input)
        assert slf_attn.shape == (B, n_head, Lq, Lq)
        assert enc_attn.shape == (B, n_head, Lq, Lk)
        assert jnp.allclose(dec_out, ref_out, atol=1e-3, rtol=1e-3)
        assert jnp.allclose(slf_attn, ref_slf, atol=1e-3, rtol=1e-3)
        assert jnp.allclose(enc_attn, ref_enc, atol=1e-3, rtol=1e-3)

    # bf16 MXU-operand path (f32 accumulation) — smoke test with loose tolerance.
    dec_out_bf, slf_bf, enc_bf = decoder_layer(
        params, dec_input, enc_output, slf_mask, enc_mask,
        n_head=n_head, d_qk=d_qk, d_v=d_v, pre_norm=False,
        compute_dtype=jnp.bfloat16)
    dec_out_bf = jax.block_until_ready(dec_out_bf)
    ref_out, ref_slf, _ = _ref_decoder_layer(
        params, dec_input, enc_output, slf_mask, enc_mask,
        n_head=n_head, d_qk=d_qk, d_v=d_v, pre_norm=False)
    assert jnp.allclose(dec_out_bf, ref_out, atol=1e-1, rtol=1e-1)
    assert jnp.allclose(slf_bf, ref_slf, atol=1e-1, rtol=1e-1)

    print("KERNEL_OK")
</pallas_src>

<mosaic_0001>
module attributes {stable_mosaic.version = 11 : i64} {
  func.func @kernel(%arg0: i32, %arg1: i32, %arg2: i32, %arg3: memref<1x8x32xf32, #tpu.memory_space<vmem>>, %arg4: memref<1x8x32xf32, #tpu.memory_space<vmem>>, %arg5: memref<1x8x8xf32, #tpu.memory_space<vmem>>, %arg6: memref<1x32x8xf32, #tpu.memory_space<vmem>>, %arg7: memref<1x32x8xf32, #tpu.memory_space<vmem>>, %arg8: memref<1x32x8xf32, #tpu.memory_space<vmem>>, %arg9: memref<1x8x32xf32, #tpu.memory_space<vmem>>, %arg10: memref<1x32xf32, #tpu.memory_space<vmem>>, %arg11: memref<1x32xf32, #tpu.memory_space<vmem>>, %arg12: memref<1x8x32xf32, #tpu.memory_space<vmem>>, %arg13: memref<1x1x8x8xf32, #tpu.memory_space<vmem>>, %arg14: memref<8x32xf32, #tpu.memory_space<vmem>>) attributes {dimension_semantics = [#tpu.dimension_semantics<parallel>, #tpu.dimension_semantics<parallel>, #tpu.dimension_semantics<arbitrary>], iteration_bounds = array<i64: 2, 1, 4>, scalar_prefetch = 0 : i64, scratch_operands = 1 : i64, tpu.core_type = #tpu.core_type<tc>, window_params = [{transform_indices = @transform_0, window_bounds = array<i64: 1, 8, 32>}, {transform_indices = @transform_1, window_bounds = array<i64: 1, 8, 32>}, {transform_indices = @transform_2, window_bounds = array<i64: 1, 8, 8>}, {transform_indices = @transform_3, window_bounds = array<i64: 1, 32, 8>}, {transform_indices = @transform_4, window_bounds = array<i64: 1, 32, 8>}, {transform_indices = @transform_5, window_bounds = array<i64: 1, 32, 8>}, {transform_indices = @transform_6, window_bounds = array<i64: 1, 8, 32>}, {pipeline_mode = #tpu.pipeline_mode<synchronous>, transform_indices = @transform_7, window_bounds = array<i64: 1, 32>}, {pipeline_mode = #tpu.pipeline_mode<synchronous>, transform_indices = @transform_8, window_bounds = array<i64: 1, 32>}, {transform_indices = @transform_9, window_bounds = array<i64: 1, 8, 32>}, {transform_indices = @transform_10, window_bounds = array<i64: 1, 1, 8, 8>}]} {
    %c0_i32 = arith.constant 0 : i32
    %0 = arith.cmpi eq, %arg2, %c0_i32 : i32
    %1 = arith.extui %0 : i1 to i32
    %c0_i32_0 = arith.constant 0 : i32
    %2 = arith.cmpi ne, %1, %c0_i32_0 : i32
    scf.if %2 {
      %cst_40 = arith.constant 0.000000e+00 : f32
      %47 = vector.broadcast %cst_40 : f32 to vector<8x32xf32>
      %c0_41 = arith.constant 0 : index
      %c0_42 = arith.constant 0 : index
      %48 = vector.load %arg14[%c0_41, %c0_42] : memref<8x32xf32, #tpu.memory_space<vmem>>, vector<8x32xf32>
      tpu.vector_store %arg14[%c0_41, %c0_42], %47 {strides = array<i32>} : memref<8x32xf32, #tpu.memory_space<vmem>>, vector<8x32xf32>,
    } else {
    }
    %c0 = arith.constant 0 : index
    %c0_1 = arith.constant 0 : index
    %c0_2 = arith.constant 0 : index
    %3 = vector.load %arg3[%c0, %c0_1, %c0_2] : memref<1x8x32xf32, #tpu.memory_space<vmem>>, vector<1x8x32xf32>
    %4 = vector.shape_cast %3 : vector<1x8x32xf32> to vector<8x32xf32>
    %c0_3 = arith.constant 0 : index
    %c0_4 = arith.constant 0 : index
    %c0_5 = arith.constant 0 : index
    %5 = vector.load %arg4[%c0_3, %c0_4, %c0_5] : memref<1x8x32xf32, #tpu.memory_space<vmem>>, vector<1x8x32xf32>
    %6 = vector.shape_cast %5 : vector<1x8x32xf32> to vector<8x32xf32>
    %c0_6 = arith.constant 0 : index
    %c0_7 = arith.constant 0 : index
    %c0_8 = arith.constant 0 : index
    %7 = vector.load %arg6[%c0_6, %c0_7, %c0_8] : memref<1x32x8xf32, #tpu.memory_space<vmem>>, vector<1x32x8xf32>
    %8 = vector.shape_cast %7 : vector<1x32x8xf32> to vector<32x8xf32>
    %cst = arith.constant dense<0.000000e+00> : vector<8x8xf32>
    %9 = tpu.matmul %4, %8, %cst {dimension_numbers = #tpu.dot_dimension_numbers<[1], [0], [0], [1], [0, 0, 1, 1], [], []>} : vector<8x32xf32>, vector<32x8xf32>, vector<8x8xf32> -> vector<8x8xf32>
    %c0_9 = arith.constant 0 : index
    %c0_10 = arith.constant 0 : index
    %c0_11 = arith.constant 0 : index
    %10 = vector.load %arg7[%c0_9, %c0_10, %c0_11] : memref<1x32x8xf32, #tpu.memory_space<vmem>>, vector<1x32x8xf32>
    %11 = vector.shape_cast %10 : vector<1x32x8xf32> to vector<32x8xf32>
    %cst_12 = arith.constant dense<0.000000e+00> : vector<8x8xf32>
    %12 = tpu.matmul %6, %11, %cst_12 {dimension_numbers = #tpu.dot_dimension_numbers<[1], [0], [0], [1], [0, 0, 1, 1], [], []>} : vector<8x32xf32>, vector<32x8xf32>, vector<8x8xf32> -> vector<8x8xf32>
    %c0_13 = arith.constant 0 : index
    %c0_14 = arith.constant 0 : index
    %c0_15 = arith.constant 0 : index
    %13 = vector.load %arg8[%c0_13, %c0_14, %c0_15] : memref<1x32x8xf32, #tpu.memory_space<vmem>>, vector<1x32x8xf32>
    %14 = vector.shape_cast %13 : vector<1x32x8xf32> to vector<32x8xf32>
    %cst_16 = arith.constant dense<0.000000e+00> : vector<8x8xf32>
    %15 = tpu.matmul %6, %14, %cst_16 {dimension_numbers = #tpu.dot_dimension_numbers<[1], [0], [0], [1], [0, 0, 1, 1], [], []>} : vector<8x32xf32>, vector<32x8xf32>, vector<8x8xf32> -> vector<8x8xf32>
    %cst_17 = arith.constant 0.353553385 : f32
    %16 = vector.broadcast %cst_17 : f32 to vector<8x8xf32>
    %17 = arith.mulf %9, %16 : vector<8x8xf32>
    %cst_18 = arith.constant dense<0.000000e+00> : vector<8x8xf32>
    %18 = tpu.matmul %17, %12, %cst_18 {dimension_numbers = #tpu.dot_dimension_numbers<[1], [1], [0], [0], [0, 0, 1, 0], [], []>} : vector<8x8xf32>, vector<8x8xf32>, vector<8x8xf32> -> vector<8x8xf32>
    %c0_19 = arith.constant 0 : index
    %c0_20 = arith.constant 0 : index
    %c0_21 = arith.constant 0 : index
    %19 = vector.load %arg5[%c0_19, %c0_20, %c0_21] : memref<1x8x8xf32, #tpu.memory_space<vmem>>, vector<1x8x8xf32>
    %20 = vector.shape_cast %19 : vector<1x8x8xf32> to vector<8x8xf32>
    %cst_22 = arith.constant 0.000000e+00 : f32
    %21 = vector.broadcast %cst_22 : f32 to vector<8x8xf32>
    %22 = arith.cmpf oeq, %20, %21 : vector<8x8xf32>
    %cst_23 = arith.constant -1.000000e+09 : f32
    %23 = vector.broadcast %cst_23 : f32 to vector<8x8xf32>
    %24 = arith.select %22, %23, %18 : vector<8x8xi1>, vector<8x8xf32>
    %cst_24 = arith.constant dense<0xFF800000> : vector<8xf32>
    %25 = vector.multi_reduction <maximumf>, %24, %cst_24 [1] : vector<8x8xf32> to vector<8xf32>
    %26 = vector.shape_cast %25 : vector<8xf32> to vector<8x1xf32>
    %27 = vector.broadcast %26 : vector<8x1xf32> to vector<8x8xf32>
    %28 = arith.subf %24, %27 : vector<8x8xf32>
    %29 = math.exp %28 : vector<8x8xf32>
    %cst_25 = arith.constant dense<0.000000e+00> : vector<8xf32>
    %30 = vector.multi_reduction <add>, %29, %cst_25 [1] : vector<8x8xf32> to vector<8xf32>
    %31 = vector.shape_cast %30 : vector<8xf32> to vector<8x1xf32>
    %32 = vector.broadcast %31 : vector<8x1xf32> to vector<8x8xf32>
    %33 = arith.divf %29, %32 : vector<8x8xf32>
    %c0_26 = arith.constant 0 : index
    %c0_27 = arith.constant 0 : index
    %c0_28 = arith.constant 0 : index
    %c0_29 = arith.constant 0 : index
    %34 = vector.load %arg13[%c0_26, %c0_27, %c0_28, %c0_29] : memref<1x1x8x8xf32, #tpu.memory_space<vmem>>, vector<1x1x8x8xf32>
    %35 = vector.shape_cast %34 : vector<1x1x8x8xf32> to vector<8x8xf32>
    %36 = vector.shape_cast %33 : vector<8x8xf32> to vector<1x1x8x8xf32>
    tpu.vector_store %arg13[%c0_26, %c0_27, %c0_28, %c0_29], %36 {strides = array<i32>} : memref<1x1x8x8xf32, #tpu.memory_space<vmem>>, vector<1x1x8x8xf32>,
    %cst_30 = arith.constant dense<0.000000e+00> : vector<8x8xf32>
    %37 = tpu.matmul %33, %15, %cst_30 {dimension_numbers = #tpu.dot_dimension_numbers<[1], [0], [0], [1], [0, 0, 1, 1], [], []>} : vector<8x8xf32>, vector<8x8xf32>, vector<8x8xf32> -> vector<8x8xf32>
    %c0_31 = arith.constant 0 : index
    %c0_32 = arith.constant 0 : index
    %38 = vector.load %arg14[%c0_31, %c0_32] : memref<8x32xf32, #tpu.memory_space<vmem>>, vector<8x32xf32>
    %c0_33 = arith.constant 0 : index
    %c0_34 = arith.constant 0 : index
    %c0_35 = arith.constant 0 : index
    %39 = vector.load %arg9[%c0_33, %c0_34, %c0_35] : memref<1x8x32xf32, #tpu.memory_space<vmem>>, vector<1x8x32xf32>
    %40 = vector.shape_cast %39 : vector<1x8x32xf32> to vector<8x32xf32>
    %cst_36 = arith.constant dense<0.000000e+00> : vector<8x32xf32>
    %41 = tpu.matmul %37, %40, %cst_36 {dimension_numbers = #tpu.dot_dimension_numbers<[1], [0], [0], [1], [0, 0, 1, 1], [], []>} : vector<8x8xf32>, vector<8x32xf32>, vector<8x32xf32> -> vector<8x32xf32>
    %42 = arith.addf %38, %41 : vector<8x32xf32>
    %c0_37 = arith.constant 0 : index
    %c0_38 = arith.constant 0 : index
    %43 = vector.load %arg14[%c0_37, %c0_38] : memref<8x32xf32, #tpu.memory_space<vmem>>, vector<8x32xf32>
    tpu.vector_store %arg14[%c0_37, %c0_38], %42 {strides = array<i32>} : memref<8x32xf32, #tpu.memory_space<vmem>>, vector<8x32xf32>,
    %c3_i32 = arith.constant 3 : i32
    %44 = arith.cmpi eq, %arg2, %c3_i32 : i32
    %45 = arith.extui %44 : i1 to i32
    %c0_i32_39 = arith.constant 0 : i32
    %46 = arith.cmpi ne, %45, %c0_i32_39 : i32
    scf.if %46 {
      %c0_40 = arith.constant 0 : index
      %c0_41 = arith.constant 0 : index
      %47 = vector.load %arg14[%c0_40, %c0_41] : memref<8x32xf32, #tpu.memory_space<vmem>>, vector<8x32xf32>
      %c0_42 = arith.constant 0 : index
      %c0_43 = arith.constant 0 : index
      %c0_44 = arith.constant 0 : index
      %48 = vector.load %arg3[%c0_42, %c0_43, %c0_44] : memref<1x8x32xf32, #tpu.memory_space<vmem>>, vector<1x8x32xf32>
      %49 = vector.shape_cast %48 : vector<1x8x32xf32> to vector<8x32xf32>
      %50 = arith.addf %47, %49 : vector<8x32xf32>
      %cst_45 = arith.constant dense<0.000000e+00> : vector<8xf32>
      %51 = vector.multi_reduction <add>, %50, %cst_45 [1] : vector<8x32xf32> to vector<8xf32>
      %52 = vector.shape_cast %51 : vector<8xf32> to vector<8x1xf32>
      %cst_46 = arith.constant 3.200000e+01 : f32
      %53 = vector.broadcast %cst_46 : f32 to vector<8x1xf32>
      %54 = arith.divf %52, %53 : vector<8x1xf32>
      %55 = vector.broadcast %54 : vector<8x1xf32> to vector<8x32xf32>
      %56 = arith.subf %50, %55 : vector<8x32xf32>
      %57 = arith.mulf %56, %56 : vector<8x32xf32>
      %cst_47 = arith.constant dense<0.000000e+00> : vector<8xf32>
      %58 = vector.multi_reduction <add>, %57, %cst_47 [1] : vector<8x32xf32> to vector<8xf32>
      %59 = vector.shape_cast %58 : vector<8xf32> to vector<8x1xf32>
      %cst_48 = arith.constant 3.200000e+01 : f32
      %60 = vector.broadcast %cst_48 : f32 to vector<8x1xf32>
      %61 = arith.divf %59, %60 : vector<8x1xf32>
      %cst_49 = arith.constant 9.99999974E-6 : f32
      %62 = vector.broadcast %cst_49 : f32 to vector<8x1xf32>
      %63 = arith.addf %61, %62 : vector<8x1xf32>
      %64 = math.rsqrt %63 : vector<8x1xf32>
      %65 = vector.broadcast %64 : vector<8x1xf32> to vector<8x32xf32>
      %66 = arith.mulf %56, %65 : vector<8x32xf32>
      %c0_50 = arith.constant 0 : index
      %c0_51 = arith.constant 0 : index
      %67 = vector.load %arg10[%c0_50, %c0_51] : memref<1x32xf32, #tpu.memory_space<vmem>>, vector<1x32xf32>
      %68 = vector.broadcast %67 : vector<1x32xf32> to vector<8x32xf32>
      %69 = arith.mulf %66, %68 : vector<8x32xf32>
      %c0_52 = arith.constant 0 : index
      %c0_53 = arith.constant 0 : index
      %70 = vector.load %arg11[%c0_52, %c0_53] : memref<1x32xf32, #tpu.memory_space<vmem>>, vector<1x32xf32>
      %71 = vector.broadcast %70 : vector<1x32xf32> to vector<8x32xf32>
      %72 = arith.addf %69, %71 : vector<8x32xf32>
      %c0_54 = arith.constant 0 : index
      %c0_55 = arith.constant 0 : index
      %c0_56 = arith.constant 0 : index
      %73 = vector.load %arg12[%c0_54, %c0_55, %c0_56] : memref<1x8x32xf32, #tpu.memory_space<vmem>>, vector<1x8x32xf32>
      %74 = vector.shape_cast %73 : vector<1x8x32xf32> to vector<8x32xf32>
      %75 = vector.shape_cast %72 : vector<8x32xf32> to vector<1x8x32xf32>
      tpu.vector_store %arg12[%c0_54, %c0_55, %c0_56], %75 {strides = array<i32>} : memref<1x8x32xf32, #tpu.memory_space<vmem>>, vector<1x8x32xf32>,
    } else {
    }
    return
  }
  func.func @transform_0(%arg0: i32, %arg1: i32, %arg2: i32) -> (i32, i32, i32) {
    %c0_i32 = arith.constant 0 : i32
    %c0_i32_0 = arith.constant 0 : i32
    return %arg0, %arg1, %c0_i32 : i32, i32, i32
  }
  func.func @transform_1(%arg0: i32, %arg1: i32, %arg2: i32) -> (i32, i32, i32) {
    %c0_i32 = arith.constant 0 : i32
    %c0_i32_0 = arith.constant 0 : i32
    %c0_i32_1 = arith.constant 0 : i32
    return %arg0, %c0_i32, %c0_i32_0 : i32, i32, i32
  }
  func.func @transform_2(%arg0: i32, %arg1: i32, %arg2: i32) -> (i32, i32, i32) {
    %c0_i32 = arith.constant 0 : i32
    %c0_i32_0 = arith.constant 0 : i32
    %c0_i32_1 = arith.constant 0 : i32
    return %c0_i32, %arg1, %c0_i32_0 : i32, i32, i32
  }
  func.func @transform_3(%arg0: i32, %arg1: i32, %arg2: i32) -> (i32, i32, i32) {
    %c0_i32 = arith.constant 0 : i32
    %c0_i32_0 = arith.constant 0 : i32
    %c0_i32_1 = arith.constant 0 : i32
    return %arg2, %c0_i32, %c0_i32_0 : i32, i32, i32
  }
  func.func @transform_4(%arg0: i32, %arg1: i32, %arg2: i32) -> (i32, i32, i32) {
    %c0_i32 = arith.constant 0 : i32
    %c0_i32_0 = arith.constant 0 : i32
    %c0_i32_1 = arith.constant 0 : i32
    return %arg2, %c0_i32, %c0_i32_0 : i32, i32, i32
  }
  func.func @transform_5(%arg0: i32, %arg1: i32, %arg2: i32) -> (i32, i32, i32) {
    %c0_i32 = arith.constant 0 : i32
    %c0_i32_0 = arith.constant 0 : i32
    %c0_i32_1 = arith.constant 0 : i32
    return %arg2, %c0_i32, %c0_i32_0 : i32, i32, i32
  }
  func.func @transform_6(%arg0: i32, %arg1: i32, %arg2: i32) -> (i32, i32, i32) {
    %c0_i32 = arith.constant 0 : i32
    %c0_i32_0 = arith.constant 0 : i32
    %c0_i32_1 = arith.constant 0 : i32
    return %arg2, %c0_i32, %c0_i32_0 : i32, i32, i32
  }
  func.func @transform_7(%arg0: i32, %arg1: i32, %arg2: i32) -> (i32, i32) {
    %c0_i32 = arith.constant 0 : i32
    %c0_i32_0 = arith.constant 0 : i32
    %c0_i32_1 = arith.constant 0 : i32
    return %c0_i32, %c0_i32_0 : i32, i32
  }
  func.func @transform_8(%arg0: i32, %arg1: i32, %arg2: i32) -> (i32, i32) {
    %c0_i32 = arith.constant 0 : i32
    %c0_i32_0 = arith.constant 0 : i32
    %c0_i32_1 = arith.constant 0 : i32
    return %c0_i32, %c0_i32_0 : i32, i32
  }
  func.func @transform_9(%arg0: i32, %arg1: i32, %arg2: i32) -> (i32, i32, i32) {
    %c0_i32 = arith.constant 0 : i32
    %c0_i32_0 = arith.constant 0 : i32
    return %arg0, %arg1, %c0_i32 : i32, i32, i32
  }
  func.func @transform_10(%arg0: i32, %arg1: i32, %arg2: i32) -> (i32, i32, i32, i32) {
    %c0_i32 = arith.constant 0 : i32
    %c0_i32_0 = arith.constant 0 : i32
    return %arg0, %arg2, %arg1, %c0_i32 : i32, i32, i32, i32
  }
}

</mosaic_0001>

<llo_original>
// kernel: tpu_custom_call.1
$region0: #{tpu_custom_call.1}
  #allocation0 [shape = 'u32[]', space=smem, size = 0x4, offset = 0x4, fixed_abs, tag = 'smem constant byte address 0x4 - core index']
  #allocation1 [shape = 'u32[144,128]{1,0:T(1,128)}', space=vmem, size = 0x12000, scoped, tag = 'internal scratch']
  #allocation2 [shape = 'f32[8,32]{1,0:T(8,128)}', space=vmem, size = 0x1000, scoped, tag = 'scratch operand']
  %s0 = inlined_call_operand.vmem [shape: f32[2,8,32], index: 0, kind: input, shape index: {}]
  %s1 = inlined_call_operand.vmem [shape: f32[2,8,32], index: 1, kind: input, shape index: {}]
  %s2 = inlined_call_operand.vmem [shape: f32[1,8,8], index: 2, kind: input, shape index: {}]
  %s3 = inlined_call_operand.vmem [shape: f32[4,32,8], index: 3, kind: input, shape index: {}]
  %s4 = inlined_call_operand.vmem [shape: f32[4,32,8], index: 4, kind: input, shape index: {}]
  %s5 = inlined_call_operand.vmem [shape: f32[4,32,8], index: 5, kind: input, shape index: {}]
  %s6 = inlined_call_operand.vmem [shape: f32[4,8,32], index: 6, kind: input, shape index: {}]
  %s7 = inlined_call_operand.vmem [shape: f32[1,32], index: 7, kind: input, shape index: {}]
  %s8 = inlined_call_operand.vmem [shape: f32[1,32], index: 8, kind: input, shape index: {}]
  %s9 = inlined_call_operand.hbm [shape: f32[2,8,32], index: 9, kind: output, shape index: {0}]
  %s10 = inlined_call_operand.hbm [shape: f32[2,4,8,8], index: 10, kind: output, shape index: {1}]
  %11 = xla_tuple %s9, %s10
  %s12 = sld [smem:[#allocation0]]
  $region85: #{tpu_custom_call.1} parent=0
    _
  %s14 = ssub.s32 1, %s12
  %s15 = scalar_select 0, %s14, %s12
  $region1: #{tpu_custom_call.1} parent=0
    #allocation3 [shape = 'u8[8192]{0}', space=vmem, size = 0x2000, scoped, tag = 'output window, operand 0']
    #allocation4 [shape = 's32[2]{0}', space=sflag, size = 0x8, scoped, tag = 'scoped memory for tpu_custom_call.1']
    #allocation5 [shape = 'u8[8192]{0}', space=vmem, size = 0x2000, scoped, tag = 'output window, operand 1']
    #allocation6 [shape = 's32[2]{0}', space=sflag, size = 0x8, scoped, tag = 'scoped memory for tpu_custom_call.1']
    %16 = vsyncpa [#allocation4], 0
    %s17 = scalar_lea.sflag [#allocation4], 1
    %18 = vsyncpa %s17, 0
    %19 = vsyncpa [#allocation6], 0
    %s20 = scalar_lea.sflag [#allocation6], 1
    %21 = vsyncpa %s20, 0
    loop: start=0, step=1, limit=10
    $region2: #{tpu_custom_call.1} parent=1 // loop_pre_header
      _
    $region3: #{tpu_custom_call.1} parent=1 // loop_header
      %s23 = sphi 0, %s27
      %p24 = scmp.ge.s32.totalorder %s23, 10
      %s30 = sphi 0, %s49
      %s31 = sphi 0, %s45
      %s32 = sphi 0, %s41
      %s33 = sphi 0, %s30
      %s34 = sphi 0, %s31
      %s35 = sphi 0, %s32
      %s36 = sphi 0, %s33
      %s37 = sphi 0, %s34
      %s38 = sphi 0, %s35
      %s54 = sphi 0, %s56
      %s57 = sphi 0, %s54
      %s58 = sphi 0, %s57
      %s74 = sphi 0, %s58
      %s80 = sphi 0, %s82
      %s83 = sphi 0, %s80
      %s84 = sphi 0, %s83
      %s100 = sphi 0, %s84
      %s106 = sphi 0, %s108
      %s109 = sphi 0, %s106
      %s110 = sphi 0, %s109
      %s126 = sphi 0, %s110
      %s132 = sphi 0, %s134
      %s135 = sphi 0, %s132
      %s136 = sphi 0, %s135
      %s152 = sphi 0, %s136
      %s158 = sphi 0, %s160
      %s161 = sphi 0, %s158
      %s162 = sphi 0, %s161
      %s178 = sphi 0, %s162
      %s184 = sphi 0, %s186
      %s187 = sphi 0, %s184
      %s188 = sphi 0, %s187
      %s204 = sphi 0, %s188
      %s210 = sphi 0, %s212
      %s213 = sphi 0, %s210
      %s214 = sphi 0, %s213
      %s230 = sphi 0, %s214
      %s234 = sphi 0, %s234
      %s236 = sphi 0, %s234
      %s237 = sphi 0, %s236
      %s251 = sphi 0, %s237
      %s255 = sphi 0, %s255
      %s257 = sphi 0, %s255
      %s258 = sphi 0, %s257
      %s272 = sphi 0, %s258
      %s280 = sphi 0, %s282
      %s283 = sphi 0, %s280
      %s284 = sphi 0, %s283
      %s300 = sphi 0, %s284
      %s310 = sphi 0, %s312
      %s313 = sphi 0, %s310
      %s314 = sphi 0, %s313
      %s330 = sphi 0, %s314
    $region4: #{tpu_custom_call.1} parent=1 // loop_header_branch
      %26 = sbr.rel (%p24) target = $region8
    $region5: #{tpu_custom_call.1} parent=1 // loop_body
      %s28 = ssub.s32 %s23, 1
      %s29 = ssub.s32 %s23, 2
      %s39 = sadd.s32 1, %s32
      %p40 = scmp.ge.s32.totalorder %s39, 4
      %s41 = scalar_select %p40, 0, %s39
      %s42 = sadd.s32 1, %s31
      %s43 = scalar_select %p40, %s42, %s31
      %p44 = scmp.ge.s32.totalorder %s43, 1
      %s45 = scalar_select %p44, 0, %s43
      %s46 = sadd.s32 1, %s30
      %s47 = scalar_select %p44, %s46, %s30
      %p48 = scmp.ge.s32.totalorder %s47, 2
      %s49 = scalar_select %p48, 0, %s47
      %s50 = ssub.s32 %s30, %s49
      %s51 = ssub.s32 %s31, %s45
      %s52 = sor.u32 %s50, %s51
      %p53 = scmp.eq.s32.totalorder %s52, 0
      %s55 = sadd.s32 %s54, 1
      %s56 = scalar_select %p53, %s54, %s55
      %p59 = pneg %p53
      %p60 = scmp.eq.s32.totalorder %s23, 7
      %p61 = por %p59, %p60
      %p62 = scmp.ne.s32.totalorder %s54, %s57
      %p63 = scmp.eq.s32.totalorder %s23, 0
      %p64 = por %p62, %p63
      %p65 = scmp.ne.s32.totalorder %s54, %s57
      %p66 = scmp.eq.s32.totalorder %s28, 7
      %p67 = por %p65, %p66
      %p68 = scmp.ne.s32.totalorder %s57, %s58
      %p69 = scmp.eq.s32.totalorder %s28, 0
      %p70 = por %p68, %p69
      %p71 = scmp.ne.s32.totalorder %s57, %s58
      %p72 = scmp.eq.s32.totalorder %s29, 7
      %p73 = por %p71, %p72
      %p75 = scmp.ne.s32.totalorder %s58, %s74
      %p76 = scmp.eq.s32.totalorder %s29, 0
      %p77 = por %p75, %p76
      %s78 = ssub.s32 %s30, %s49
      %p79 = scmp.eq.s32.totalorder %s78, 0
      %s81 = sadd.s32 %s80, 1
      %s82 = scalar_select %p79, %s80, %s81
      %p85 = pneg %p79
      %p86 = scmp.eq.s32.totalorder %s23, 7
      %p87 = por %p85, %p86
      %p88 = scmp.ne.s32.totalorder %s80, %s83
      %p89 = scmp.eq.s32.totalorder %s23, 0
      %p90 = por %p88, %p89
      %p91 = scmp.ne.s32.totalorder %s80, %s83
      %p92 = scmp.eq.s32.totalorder %s28, 7
      %p93 = por %p91, %p92
      %p94 = scmp.ne.s32.totalorder %s83, %s84
      %p95 = scmp.eq.s32.totalorder %s28, 0
      %p96 = por %p94, %p95
      %p97 = scmp.ne.s32.totalorder %s83, %s84
      %p98 = scmp.eq.s32.totalorder %s29, 7
      %p99 = por %p97, %p98
      %p101 = scmp.ne.s32.totalorder %s84, %s100
      %p102 = scmp.eq.s32.totalorder %s29, 0
      %p103 = por %p101, %p102
      %s104 = ssub.s32 %s31, %s45
      %p105 = scmp.eq.s32.totalorder %s104, 0
      %s107 = sadd.s32 %s106, 1
      %s108 = scalar_select %p105, %s106, %s107
      %p111 = pneg %p105
      %p112 = scmp.eq.s32.totalorder %s23, 7
      %p113 = por %p111, %p112
      %p114 = scmp.ne.s32.totalorder %s106, %s109
      %p115 = scmp.eq.s32.totalorder %s23, 0
      %p116 = por %p114, %p115
      %p117 = scmp.ne.s32.totalorder %s106, %s109
      %p118 = scmp.eq.s32.totalorder %s28, 7
      %p119 = por %p117, %p118
      %p120 = scmp.ne.s32.totalorder %s109, %s110
      %p121 = scmp.eq.s32.totalorder %s28, 0
      %p122 = por %p120, %p121
      %p123 = scmp.ne.s32.totalorder %s109, %s110
      %p124 = scmp.eq.s32.totalorder %s29, 7
      %p125 = por %p123, %p124
      %p127 = scmp.ne.s32.totalorder %s110, %s126
      %p128 = scmp.eq.s32.totalorder %s29, 0
      %p129 = por %p127, %p128
      %s130 = ssub.s32 %s32, %s41
      %p131 = scmp.eq.s32.totalorder %s130, 0
      %s133 = sadd.s32 %s132, 1
      %s134 = scalar_select %p131, %s132, %s133
      %p137 = pneg %p131
      %p138 = scmp.eq.s32.totalorder %s23, 7
      %p139 = por %p137, %p138
      %p140 = scmp.ne.s32.totalorder %s132, %s135
      %p141 = scmp.eq.s32.totalorder %s23, 0
      %p142 = por %p140, %p141
      %p143 = scmp.ne.s32.totalorder %s132, %s135
      %p144 = scmp.eq.s32.totalorder %s28, 7
      %p145 = por %p143, %p144
      %p146 = scmp.ne.s32.totalorder %s135, %s136
      %p147 = scmp.eq.s32.totalorder %s28, 0
      %p148 = por %p146, %p147
      %p149 = scmp.ne.s32.totalorder %s135, %s136
      %p150 = scmp.eq.s32.totalorder %s29, 7
      %p151 = por %p149, %p150
      %p153 = scmp.ne.s32.totalorder %s136, %s152
      %p154 = scmp.eq.s32.totalorder %s29, 0
      %p155 = por %p153, %p154
      %s156 = ssub.s32 %s32, %s41
      %p157 = scmp.eq.s32.totalorder %s156, 0
      %s159 = sadd.s32 %s158, 1
      %s160 = scalar_select %p157, %s158, %s159
      %p163 = pneg %p157
      %p164 = scmp.eq.s32.totalorder %s23, 7
      %p165 = por %p163, %p164
      %p166 = scmp.ne.s32.totalorder %s158, %s161
      %p167 = scmp.eq.s32.totalorder %s23, 0
      %p168 = por %p166, %p167
      %p169 = scmp.ne.s32.totalorder %s158, %s161
      %p170 = scmp.eq.s32.totalorder %s28, 7
      %p171 = por %p169, %p170
      %p172 = scmp.ne.s32.totalorder %s161, %s162
      %p173 = scmp.eq.s32.totalorder %s28, 0
      %p174 = por %p172, %p173
      %p175 = scmp.ne.s32.totalorder %s161, %s162
      %p176 = scmp.eq.s32.totalorder %s29, 7
      %p177 = por %p175, %p176
      %p179 = scmp.ne.s32.totalorder %s162, %s178
      %p180 = scmp.eq.s32.totalorder %s29, 0
      %p181 = por %p179, %p180
      %s182 = ssub.s32 %s32, %s41
      %p183 = scmp.eq.s32.totalorder %s182, 0
      %s185 = sadd.s32 %s184, 1
      %s186 = scalar_select %p183, %s184, %s185
      %p189 = pneg %p183
      %p190 = scmp.eq.s32.totalorder %s23, 7
      %p191 = por %p189, %p190
      %p192 = scmp.ne.s32.totalorder %s184, %s187
      %p193 = scmp.eq.s32.totalorder %s23, 0
      %p194 = por %p192, %p193
      %p195 = scmp.ne.s32.totalorder %s184, %s187
      %p196 = scmp.eq.s32.totalorder %s28, 7
      %p197 = por %p195, %p196
      %p198 = scmp.ne.s32.totalorder %s187, %s188
      %p199 = scmp.eq.s32.totalorder %s28, 0
      %p200 = por %p198, %p199
      %p201 = scmp.ne.s32.totalorder %s187, %s188
      %p202 = scmp.eq.s32.totalorder %s29, 7
      %p203 = por %p201, %p202
      %p205 = scmp.ne.s32.totalorder %s188, %s204
      %p206 = scmp.eq.s32.totalorder %s29, 0
      %p207 = por %p205, %p206
      %s208 = ssub.s32 %s32, %s41
      %p209 = scmp.eq.s32.totalorder %s208, 0
      %s211 = sadd.s32 %s210, 1
      %s212 = scalar_select %p209, %s210, %s211
      %p215 = pneg %p209
      %p216 = scmp.eq.s32.totalorder %s23, 7
      %p217 = por %p215, %p216
      %p218 = scmp.ne.s32.totalorder %s210, %s213
      %p219 = scmp.eq.s32.totalorder %s23, 0
      %p220 = por %p218, %p219
      %p221 = scmp.ne.s32.totalorder %s210, %s213
      %p222 = scmp.eq.s32.totalorder %s28, 7
      %p223 = por %p221, %p222
      %p224 = scmp.ne.s32.totalorder %s213, %s214
      %p225 = scmp.eq.s32.totalorder %s28, 0
      %p226 = por %p224, %p225
      %p227 = scmp.ne.s32.totalorder %s213, %s214
      %p228 = scmp.eq.s32.totalorder %s29, 7
      %p229 = por %p227, %p228
      %p231 = scmp.ne.s32.totalorder %s214, %s230
      %p232 = scmp.eq.s32.totalorder %s29, 0
      %p233 = por %p231, %p232
      %s235 = sadd.s32 %s234, 1
      %p238 = scmp.eq.s32.totalorder %s23, 7
      %p239 = scmp.ne.s32.totalorder %s234, %s236
      %p240 = scmp.eq.s32.totalorder %s23, 0
      %p241 = por %p239, %p240
      %p242 = scmp.ne.s32.totalorder %s234, %s236
      %p243 = scmp.eq.s32.totalorder %s28, 7
      %p244 = por %p242, %p243
      %p245 = scmp.ne.s32.totalorder %s236, %s237
      %p246 = scmp.eq.s32.totalorder %s28, 0
      %p247 = por %p245, %p246
      %p248 = scmp.ne.s32.totalorder %s236, %s237
      %p249 = scmp.eq.s32.totalorder %s29, 7
      %p250 = por %p248, %p249
      %p252 = scmp.ne.s32.totalorder %s237, %s251
      %p253 = scmp.eq.s32.totalorder %s29, 0
      %p254 = por %p252, %p253
      %s256 = sadd.s32 %s255, 1
      %p259 = scmp.eq.s32.totalorder %s23, 7
      %p260 = scmp.ne.s32.totalorder %s255, %s257
      %p261 = scmp.eq.s32.totalorder %s23, 0
      %p262 = por %p260, %p261
      %p263 = scmp.ne.s32.totalorder %s255, %s257
      %p264 = scmp.eq.s32.totalorder %s28, 7
      %p265 = por %p263, %p264
      %p266 = scmp.ne.s32.totalorder %s257, %s258
      %p267 = scmp.eq.s32.totalorder %s28, 0
      %p268 = por %p266, %p267
      %p269 = scmp.ne.s32.totalorder %s257, %s258
      %p270 = scmp.eq.s32.totalorder %s29, 7
      %p271 = por %p269, %p270
      %p273 = scmp.ne.s32.totalorder %s258, %s272
      %p274 = scmp.eq.s32.totalorder %s29, 0
      %p275 = por %p273, %p274
      %s276 = ssub.s32 %s30, %s49
      %s277 = ssub.s32 %s31, %s45
      %s278 = sor.u32 %s276, %s277
      %p279 = scmp.eq.s32.totalorder %s278, 0
      %s281 = sadd.s32 %s280, 1
      %s282 = scalar_select %p279, %s280, %s281
      %p285 = pneg %p279
      %p286 = scmp.eq.s32.totalorder %s23, 7
      %p287 = por %p285, %p286
      %p288 = scmp.ne.s32.totalorder %s280, %s283
      %p289 = scmp.eq.s32.totalorder %s23, 0
      %p290 = por %p288, %p289
      %p291 = scmp.ne.s32.totalorder %s280, %s283
      %p292 = scmp.eq.s32.totalorder %s28, 7
      %p293 = por %p291, %p292
      %p294 = scmp.ne.s32.totalorder %s283, %s284
      %p295 = scmp.eq.s32.totalorder %s28, 0
      %p296 = por %p294, %p295
      %p297 = scmp.ne.s32.totalorder %s283, %s284
      %p298 = scmp.eq.s32.totalorder %s29, 7
      %p299 = por %p297, %p298
      %p301 = scmp.ne.s32.totalorder %s284, %s300
      %p302 = scmp.eq.s32.totalorder %s29, 0
      %p303 = por %p301, %p302
      %s304 = ssub.s32 %s30, %s49
      %s305 = ssub.s32 %s32, %s41
      %s306 = sor.u32 %s304, %s305
      %s307 = ssub.s32 %s31, %s45
      %s308 = sor.u32 %s306, %s307
      %p309 = scmp.eq.s32.totalorder %s308, 0
      %s311 = sadd.s32 %s310, 1
      %s312 = scalar_select %p309, %s310, %s311
      %p315 = pneg %p309
      %p316 = scmp.eq.s32.totalorder %s23, 7
      %p317 = por %p315, %p316
      %p318 = scmp.ne.s32.totalorder %s310, %s313
      %p319 = scmp.eq.s32.totalorder %s23, 0
      %p320 = por %p318, %p319
      %p321 = scmp.ne.s32.totalorder %s310, %s313
      %p322 = scmp.eq.s32.totalorder %s28, 7
      %p323 = por %p321, %p322
      %p324 = scmp.ne.s32.totalorder %s313, %s314
      %p325 = scmp.eq.s32.totalorder %s28, 0
      %p326 = por %p324, %p325
      %p327 = scmp.ne.s32.totalorder %s313, %s314
      %p328 = scmp.eq.s32.totalorder %s29, 7
      %p329 = por %p327, %p328
      %p331 = scmp.ne.s32.totalorder %s314, %s330
      %p332 = scmp.eq.s32.totalorder %s29, 0
      %p333 = por %p331, %p332
      %p334 = scmp.le.s32.totalorder 1, %s23
      %p335 = scmp.lt.s32.totalorder %s23, 9
      %p336 = pnand %p334, %p335
      %p337 = pneg %p336
      // Predicated region
      $region9: #{tpu_custom_call.1} parent=5 // pred_check
        _
      $region10: #{tpu_custom_call.1} parent=5 // pred_check_branch
        %339 = sbr.rel (%p336) target = $region12
      $region11: #{tpu_custom_call.1} parent=5 // pred_region
        %s340 = ssub.s32 %s23, 1
        // Predicated region
        $region13: #{tpu_custom_call.1} parent=11 // pred_check
          %p341 = pneg %p122
        $region14: #{tpu_custom_call.1} parent=11 // pred_check_branch
          %343 = sbr.rel (%p341) target = $region16
        $region15: #{tpu_custom_call.1} parent=11 // pred_region
          %p344 = scmp.lt.s32.totalorder %s34, 0
          %s345 = scalar_select %p344, %s34, 0
          %s346 = smul.addr %s345, 8
          %s347 = scalar_lea.vmem %s2, %s346
        $region16: #{tpu_custom_call.1} parent=11 // pred_fallthru
          _
        // Predicated region
        $region17: #{tpu_custom_call.1} parent=11 // pred_check
          %p348 = pneg %p247
        $region18: #{tpu_custom_call.1} parent=11 // pred_check_branch
          %350 = sbr.rel (%p348) target = $region20
        $region19: #{tpu_custom_call.1} parent=11 // pred_region
          _
        $region20: #{tpu_custom_call.1} parent=11 // pred_fallthru
          _
        // Predicated region
        $region21: #{tpu_custom_call.1} parent=11 // pred_check
          %p351 = pneg %p268
        $region22: #{tpu_custom_call.1} parent=11 // pred_check_branch
          %353 = sbr.rel (%p351) target = $region24
        $region23: #{tpu_custom_call.1} parent=11 // pred_region
          _
        $region24: #{tpu_custom_call.1} parent=11 // pred_fallthru
          _
      $region12: #{tpu_custom_call.1} parent=5 // pred_fallthru
        _
      %p354 = scmp.lt.s32.totalorder %s23, 8
      // Predicated region
      $region25: #{tpu_custom_call.1} parent=5 // pred_check
        %p355 = pneg %p354
      $region26: #{tpu_custom_call.1} parent=5 // pred_check_branch
        %357 = sbr.rel (%p355) target = $region28
      $region27: #{tpu_custom_call.1} parent=5 // pred_region
        // Predicated region
        $region29: #{tpu_custom_call.1} parent=27 // pred_check
          %p358 = pneg %p64
        $region30: #{tpu_custom_call.1} parent=27 // pred_check_branch
          %360 = sbr.rel (%p358) target = $region32
        $region31: #{tpu_custom_call.1} parent=27 // pred_region
          %p361 = scmp.lt.s32.totalorder %s30, 1
          %s362 = scalar_select %p361, %s30, 1
          %p363 = scmp.lt.s32.totalorder %s31, 0
          %s364 = scalar_select %p363, %s31, 0
          %s365 = sadd.s32 %s364, %s362
          %s366 = smul.addr %s365, 8
          %s367 = scalar_lea.vmem %s0, %s366
        $region32: #{tpu_custom_call.1} parent=27 // pred_fallthru
          _
        // Predicated region
        $region33: #{tpu_custom_call.1} parent=27 // pred_check
          %p368 = pneg %p90
        $region34: #{tpu_custom_call.1} parent=27 // pred_check_branch
          %370 = sbr.rel (%p368) target = $region36
        $region35: #{tpu_custom_call.1} parent=27 // pred_region
          %p371 = scmp.lt.s32.totalorder %s30, 1
          %s372 = scalar_select %p371, %s30, 1
          %s373 = smul.addr %s372, 8
          %s374 = scalar_lea.vmem %s1, %s373
        $region36: #{tpu_custom_call.1} parent=27 // pred_fallthru
          _
        // Predicated region
        $region37: #{tpu_custom_call.1} parent=27 // pred_check
          %p375 = pneg %p142
        $region38: #{tpu_custom_call.1} parent=27 // pred_check_branch
          %377 = sbr.rel (%p375) target = $region40
        $region39: #{tpu_custom_call.1} parent=27 // pred_region
          %p378 = scmp.lt.s32.totalorder %s32, 3
          %s379 = scalar_select %p378, %s32, 3
          %s380 = smul.addr %s379, 4
          %s381 = smul.addr %s380, 8
          %s382 = scalar_lea.vmem %s3, %s381
        $region40: #{tpu_custom_call.1} parent=27 // pred_fallthru
          _
        // Predicated region
        $region41: #{tpu_custom_call.1} parent=27 // pred_check
          %p383 = pneg %p168
        $region42: #{tpu_custom_call.1} parent=27 // pred_check_branch
          %385 = sbr.rel (%p383) target = $region44
        $region43: #{tpu_custom_call.1} parent=27 // pred_region
          %p386 = scmp.lt.s32.totalorder %s32, 3
          %s387 = scalar_select %p386, %s32, 3
          %s388 = smul.addr %s387, 4
          %s389 = smul.addr %s388, 8
          %s390 = scalar_lea.vmem %s4, %s389
        $region44: #{tpu_custom_call.1} parent=27 // pred_fallthru
          _
        // Predicated region
        $region45: #{tpu_custom_call.1} parent=27 // pred_check
          %p391 = pneg %p194
        $region46: #{tpu_custom_call.1} parent=27 // pred_check_branch
          %393 = sbr.rel (%p391) target = $region48
        $region47: #{tpu_custom_call.1} parent=27 // pred_region
          %p394 = scmp.lt.s32.totalorder %s32, 3
          %s395 = scalar_select %p394, %s32, 3
          %s396 = smul.addr %s395, 4
          %s397 = smul.addr %s396, 8
          %s398 = scalar_lea.vmem %s5, %s397
        $region48: #{tpu_custom_call.1} parent=27 // pred_fallthru
          _
        // Predicated region
        $region49: #{tpu_custom_call.1} parent=27 // pred_check
          %p399 = pneg %p220
        $region50: #{tpu_custom_call.1} parent=27 // pred_check_branch
          %401 = sbr.rel (%p399) target = $region52
        $region51: #{tpu_custom_call.1} parent=27 // pred_region
          %p402 = scmp.lt.s32.totalorder %s32, 3
          %s403 = scalar_select %p402, %s32, 3
          %s404 = smul.addr %s403, 8
          %s405 = scalar_lea.vmem %s6, %s404
        $region52: #{tpu_custom_call.1} parent=27 // pred_fallthru
          _
      $region28: #{tpu_custom_call.1} parent=5 // pred_fallthru
        _
      %p406 = scmp.le.s32.totalorder 1, %s23
      %p407 = scmp.lt.s32.totalorder %s23, 9
      %p408 = pnand %p406, %p407
      %p409 = pneg %p408
      // Predicated region
      $region53: #{tpu_custom_call.1} parent=5 // pred_check
        _
      $region54: #{tpu_custom_call.1} parent=5 // pred_check_branch
        %411 = sbr.rel (%p408) target = $region56
      $region55: #{tpu_custom_call.1} parent=5 // pred_region
        %s412 = ssub.s32 %s23, 1
        %p413 = scmp.lt.s32.totalorder %s33, 1
        %s414 = scalar_select %p413, %s33, 1
        %p415 = scmp.lt.s32.totalorder %s34, 0
        %s416 = scalar_select %p415, %s34, 0
        %s417 = sadd.s32 %s416, %s414
        %s418 = smul.addr %s417, 8
        %s419 = scalar_lea.vmem %s0, %s418
        %p420 = pneg %p70
        %p421 = pneg %p67
        %p422 = scmp.lt.s32.totalorder %s33, 1
        %s423 = scalar_select %p422, %s33, 1
        %s424 = smul.addr %s423, 8
        %s425 = scalar_lea.vmem %s1, %s424
        %p426 = pneg %p96
        %p427 = pneg %p93
        %p428 = scmp.lt.s32.totalorder %s34, 0
        %s429 = scalar_select %p428, %s34, 0
        %s430 = smul.addr %s429, 8
        %s431 = scalar_lea.vmem %s2, %s430
        %p432 = pneg %p122
        %p433 = pneg %p119
        %p434 = scmp.lt.s32.totalorder %s35, 3
        %s435 = scalar_select %p434, %s35, 3
        %s436 = smul.addr %s435, 4
        %s437 = smul.addr %s436, 8
        %s438 = scalar_lea.vmem %s3, %s437
        %p439 = pneg %p148
        %p440 = pneg %p145
        %p441 = scmp.lt.s32.totalorder %s35, 3
        %s442 = scalar_select %p441, %s35, 3
        %s443 = smul.addr %s442, 4
        %s444 = smul.addr %s443, 8
        %s445 = scalar_lea.vmem %s4, %s444
        %p446 = pneg %p174
        %p447 = pneg %p171
        %p448 = scmp.lt.s32.totalorder %s35, 3
        %s449 = scalar_select %p448, %s35, 3
        %s450 = smul.addr %s449, 4
        %s451 = smul.addr %s450, 8
        %s452 = scalar_lea.vmem %s5, %s451
        %p453 = pneg %p200
        %p454 = pneg %p197
        %p455 = scmp.lt.s32.totalorder %s35, 3
        %s456 = scalar_select %p455, %s35, 3
        %s457 = smul.addr %s456, 8
        %s458 = scalar_lea.vmem %s6, %s457
        %p459 = pneg %p226
        %p460 = pneg %p223
        %p461 = pneg %p247
        %p462 = pneg %p244
        %p463 = pneg %p268
        %p464 = pneg %p265
        %p465 = pneg %p296
        %p466 = pneg %p293
        %s467 = sand.u32 %s283, 1
        %s468 = scalar_lea.sflag [#allocation4], %s467
        %s469 = sand.u32 %s283, 1
        %s470 = smul.addr %s469, 8
        %s471 = scalar_lea.vmem [#allocation3], %s470
        %p472 = pneg %p326
        %p473 = pneg %p323
        %s474 = sand.u32 %s313, 1
        %s475 = scalar_lea.sflag [#allocation6], %s474
        %s476 = sand.u32 %s313, 1
        %s477 = smul.addr %s476, 8
        %s478 = scalar_lea.vmem [#allocation5], %s477
        %p479 = scmp.lt.s32.totalorder %s33, 1
        %s480 = scalar_select %p479, %s33, 1
        %p481 = scmp.lt.s32.totalorder %s34, 0
        %s482 = scalar_select %p481, %s34, 0
        %s483 = sadd.s32 %s482, %s480
        %s484 = smul.addr %s483, 8
        %s485 = scalar_lea.vmem %s0, %s484
        %p486 = scmp.lt.s32.totalorder %s33, 1
        %s487 = scalar_select %p486, %s33, 1
        %s488 = smul.addr %s487, 8
        %s489 = scalar_lea.vmem %s1, %s488
        %p490 = scmp.lt.s32.totalorder %s34, 0
        %s491 = scalar_select %p490, %s34, 0
        %s492 = smul.addr %s491, 8
        %s493 = scalar_lea.vmem %s2, %s492
        %p494 = scmp.lt.s32.totalorder %s35, 3
        %s495 = scalar_select %p494, %s35, 3
        %s496 = smul.addr %s495, 4
        %s497 = smul.addr %s496, 8
        %s498 = scalar_lea.vmem %s3, %s497
        %p499 = scmp.lt.s32.totalorder %s35, 3
        %s500 = scalar_select %p499, %s35, 3
        %s501 = smul.addr %s500, 4
        %s502 = smul.addr %s501, 8
        %s503 = scalar_lea.vmem %s4, %s502
        %p504 = scmp.lt.s32.totalorder %s35, 3
        %s505 = scalar_select %p504, %s35, 3
        %s506 = smul.addr %s505, 4
        %s507 = smul.addr %s506, 8
        %s508 = scalar_lea.vmem %s5, %s507
        %p509 = scmp.lt.s32.totalorder %s35, 3
        %s510 = scalar_select %p509, %s35, 3
        %s511 = smul.addr %s510, 8
        %s512 = scalar_lea.vmem %s6, %s511
        %p513 = scmp.eq.s32.totalorder %s35, 0
        // Predicated region
        $region57: #{tpu_custom_call.1} parent=55 // pred_check
          %p514 = pneg %p513
        $region58: #{tpu_custom_call.1} parent=55 // pred_check_branch
          %516 = sbr.rel (%p514) target = $region60
        $region59: #{tpu_custom_call.1} parent=55 // pred_region
          %vm517 = vcmask 261120
          %518 = vst.msk [vmem:[#allocation2] sm:$0xff] %vm517, 0.0
        $region60: #{tpu_custom_call.1} parent=55 // pred_fallthru
          _
        %v519 = vld [vmem:[%s485] sm:$0xff]
        %v520 = vld [vmem:[%s489] sm:$0xff]
        %v521 = vld [vmem:[%s498] sm:$0xff]
        %v522 = vld [vmem:[%s498 + $0x8] sm:$0xff]
        %v523 = vld [vmem:[%s498 + $0x10] sm:$0xff]
        %v524 = vld [vmem:[%s498 + $0x18] sm:$0xff]
        %vm525 = vcmask 261120
        %v527 = vsel %vm525, %v519, 0
        %529 = vmatprep.subr.mxu0 0.0
        %530 = vmatpush1.msra.mxu0 0.0
        %531 = vmatprep.subr.mxu0 0.0
        %532 = vmatpush1.msra.mxu0 0.0
        %533 = vmatprep.subr.mxu0 0.0
        %534 = vmatpush1.msra.mxu0 0.0
        %535 = vmatprep.subr.mxu0 0.0
        %536 = vmatpush1.msra.mxu0 0.0
        %537 = vmatprep.subr.mxu0 0.0
        %538 = vmatpush1.msra.mxu0 0.0
        %539 = vmatprep.subr.mxu0 0.0
        %540 = vmatpush1.msra.mxu0 0.0
        %541 = vmatprep.subr.mxu0 0.0
        %542 = vmatpush1.msra.mxu0 0.0
        %543 = vmatprep.subr.mxu0 0.0
        %544 = vmatpush1.msra.mxu0 0.0
        %545 = vmatprep.subr.mxu0 0.0
        %546 = vmatpush1.msra.mxu0 0.0
        %547 = vmatprep.subr.mxu0 0.0
        %548 = vmatpush1.msra.mxu0 0.0
        %549 = vmatprep.subr.mxu0 0.0
        %550 = vmatpush1.msra.mxu0 0.0
        %551 = vmatprep.subr.mxu0 0.0
        %552 = vmatpush1.msra.mxu0 0.0
        %553 = vmatprep.subr.mxu0 0.0
        %554 = vmatpush1.msra.mxu0 %v524
        %555 = vmatprep.subr.mxu0 0.0
        %556 = vmatpush1.msra.mxu0 %v523
        %557 = vmatprep.subr.mxu0 0.0
        %558 = vmatpush1.msra.mxu0 %v522
        %559 = vmatprep.subr.mxu0 0.0
        %560 = vmatpush1.msra.mxu0 %v521
        %561 = vmatprep.subr.mxu0 0.0
        %562 = vmatpush2.msra.mxu0 0.0
        %563 = vmatprep.subr.mxu0 0.0
        %564 = vmatpush2.msra.mxu0 0.0
        %565 = vmatprep.subr.mxu0 0.0
        %566 = vmatpush2.msra.mxu0 0.0
        %567 = vmatprep.subr.mxu0 0.0
        %568 = vmatpush2.msra.mxu0 0.0
        %569 = vmatprep.subr.mxu0 0.0
        %570 = vmatpush2.msra.mxu0 0.0
        %571 = vmatprep.subr.mxu0 0.0
        %572 = vmatpush2.msra.mxu0 0.0
        %573 = vmatprep.subr.mxu0 0.0
        %574 = vmatpush2.msra.mxu0 0.0
        %575 = vmatprep.subr.mxu0 0.0
        %576 = vmatpush2.msra.mxu0 0.0
        %577 = vmatprep.subr.mxu0 0.0
        %578 = vmatpush2.msra.mxu0 0.0
        %579 = vmatprep.subr.mxu0 0.0
        %580 = vmatpush2.msra.mxu0 0.0
        %581 = vmatprep.subr.mxu0 0.0
        %582 = vmatpush2.msra.mxu0 0.0
        %583 = vmatprep.subr.mxu0 0.0
        %584 = vmatpush2.msra.mxu0 0.0
        %585 = vmatprep.subr.mxu0 0.0
        %586 = vmatpush2.msra.mxu0 0.0
        %587 = vmatprep.subr.mxu0 0.0
        %588 = vmatpush2.msra.mxu0 0.0
        %589 = vmatprep.subr.mxu0 0.0
        %590 = vmatpush2.msra.mxu0 0.0
        %591 = vmatprep.subr.mxu0 0.0
        %592 = vmatpush2.msra.mxu0 0.0
        %593 = vmatprep.mubr.f32.mxu0 0.0
        %594 = vmatmul.mubr.f32.gmra.mxu0 %v527
        %v595 = vpop.f32.mrf.mxu0
        %v596 = vadd.f32 0.0, %v595
        %v597 = vpop.f32.mrf.mxu0
        %598 = vdwg.mxu0
        %v599 = vld [vmem:[%s503] sm:$0xff]
        %v600 = vld [vmem:[%s503 + $0x8] sm:$0xff]
        %v601 = vld [vmem:[%s503 + $0x10] sm:$0xff]
        %v602 = vld [vmem:[%s503 + $0x18] sm:$0xff]
        %v604 = vsel %vm525, %v520, 0
        %606 = vmatprep.subr.mxu0 0.0
        %607 = vmatpush1.msra.mxu0 0.0
        %608 = vmatprep.subr.mxu0 0.0
        %609 = vmatpush1.msra.mxu0 0.0
        %610 = vmatprep.subr.mxu0 0.0
        %611 = vmatpush1.msra.mxu0 0.0
        %612 = vmatprep.subr.mxu0 0.0
        %613 = vmatpush1.msra.mxu0 0.0
        %614 = vmatprep.subr.mxu0 0.0
        %615 = vmatpush1.msra.mxu0 0.0
        %616 = vmatprep.subr.mxu0 0.0
        %617 = vmatpush1.msra.mxu0 0.0
        %618 = vmatprep.subr.mxu0 0.0
        %619 = vmatpush1.msra.mxu0 0.0
        %620 = vmatprep.subr.mxu0 0.0
        %621 = vmatpush1.msra.mxu0 0.0
        %622 = vmatprep.subr.mxu0 0.0
        %623 = vmatpush1.msra.mxu0 0.0
        %624 = vmatprep.subr.mxu0 0.0
        %625 = vmatpush1.msra.mxu0 0.0
        %626 = vmatprep.subr.mxu0 0.0
        %627 = vmatpush1.msra.mxu0 0.0
        %628 = vmatprep.subr.mxu0 0.0
        %629 = vmatpush1.msra.mxu0 0.0
        %630 = vmatprep.subr.mxu0 0.0
        %631 = vmatpush1.msra.mxu0 %v602
        %632 = vmatprep.subr.mxu0 0.0
        %633 = vmatpush1.msra.mxu0 %v601
        %634 = vmatprep.subr.mxu0 0.0
        %635 = vmatpush1.msra.mxu0 %v600
        %636 = vmatprep.subr.mxu0 0.0
        %637 = vmatpush1.msra.mxu0 %v599
        %638 = vmatprep.subr.mxu0 0.0
        %639 = vmatpush2.msra.mxu0 0.0
        %640 = vmatprep.subr.mxu0 0.0
        %641 = vmatpush2.msra.mxu0 0.0
        %642 = vmatprep.subr.mxu0 0.0
        %643 = vmatpush2.msra.mxu0 0.0
        %644 = vmatprep.subr.mxu0 0.0
        %645 = vmatpush2.msra.mxu0 0.0
        %646 = vmatprep.subr.mxu0 0.0
        %647 = vmatpush2.msra.mxu0 0.0
        %648 = vmatprep.subr.mxu0 0.0
        %649 = vmatpush2.msra.mxu0 0.0
        %650 = vmatprep.subr.mxu0 0.0
        %651 = vmatpush2.msra.mxu0 0.0
        %652 = vmatprep.subr.mxu0 0.0
        %653 = vmatpush2.msra.mxu0 0.0
        %654 = vmatprep.subr.mxu0 0.0
        %655 = vmatpush2.msra.mxu0 0.0
        %656 = vmatprep.subr.mxu0 0.0
        %657 = vmatpush2.msra.mxu0 0.0
        %658 = vmatprep.subr.mxu0 0.0
        %659 = vmatpush2.msra.mxu0 0.0
        %660 = vmatprep.subr.mxu0 0.0
        %661 = vmatpush2.msra.mxu0 0.0
        %662 = vmatprep.subr.mxu0 0.0
        %663 = vmatpush2.msra.mxu0 0.0
        %664 = vmatprep.subr.mxu0 0.0
        %665 = vmatpush2.msra.mxu0 0.0
        %666 = vmatprep.subr.mxu0 0.0
        %667 = vmatpush2.msra.mxu0 0.0
        %668 = vmatprep.subr.mxu0 0.0
        %669 = vmatpush2.msra.mxu0 0.0
        %670 = vmatprep.mubr.f32.mxu0 0.0
        %671 = vmatmul.mubr.f32.gmra.mxu0 %v604
        %v672 = vpop.f32.mrf.mxu0
        %v673 = vadd.f32 0.0, %v672
        %v674 = vpop.f32.mrf.mxu0
        %675 = vdwg.mxu0
        %v676 = vld [vmem:[%s508] sm:$0xff]
        %v677 = vld [vmem:[%s508 + $0x8] sm:$0xff]
        %v678 = vld [vmem:[%s508 + $0x10] sm:$0xff]
        %v679 = vld [vmem:[%s508 + $0x18] sm:$0xff]
        %680 = vmatprep.subr.mxu0 0.0
        %681 = vmatpush1.msra.mxu0 0.0
        %682 = vmatprep.subr.mxu0 0.0
        %683 = vmatpush1.msra.mxu0 0.0
        %684 = vmatprep.subr.mxu0 0.0
        %685 = vmatpush1.msra.mxu0 0.0
        %686 = vmatprep.subr.mxu0 0.0
        %687 = vmatpush1.msra.mxu0 0.0
        %688 = vmatprep.subr.mxu0 0.0
        %689 = vmatpush1.msra.mxu0 0.0
        %690 = vmatprep.subr.mxu0 0.0
        %691 = vmatpush1.msra.mxu0 0.0
        %692 = vmatprep.subr.mxu0 0.0
        %693 = vmatpush1.msra.mxu0 0.0
        %694 = vmatprep.subr.mxu0 0.0
        %695 = vmatpush1.msra.mxu0 0.0
        %696 = vmatprep.subr.mxu0 0.0
        %697 = vmatpush1.msra.mxu0 0.0
        %698 = vmatprep.subr.mxu0 0.0
        %699 = vmatpush1.msra.mxu0 0.0
        %700 = vmatprep.subr.mxu0 0.0
        %701 = vmatpush1.msra.mxu0 0.0
        %702 = vmatprep.subr.mxu0 0.0
        %703 = vmatpush1.msra.mxu0 0.0
        %704 = vmatprep.subr.mxu0 0.0
        %705 = vmatpush1.msra.mxu0 %v679
        %706 = vmatprep.subr.mxu0 0.0
        %707 = vmatpush1.msra.mxu0 %v678
        %708 = vmatprep.subr.mxu0 0.0
        %709 = vmatpush1.msra.mxu0 %v677
        %710 = vmatprep.subr.mxu0 0.0
        %711 = vmatpush1.msra.mxu0 %v676
        %712 = vmatprep.subr.mxu0 0.0
        %713 = vmatpush2.msra.mxu0 0.0
        %714 = vmatprep.subr.mxu0 0.0
        %715 = vmatpush2.msra.mxu0 0.0
        %716 = vmatprep.subr.mxu0 0.0
        %717 = vmatpush2.msra.mxu0 0.0
        %718 = vmatprep.subr.mxu0 0.0
        %719 = vmatpush2.msra.mxu0 0.0
        %720 = vmatprep.subr.mxu0 0.0
        %721 = vmatpush2.msra.mxu0 0.0
        %722 = vmatprep.subr.mxu0 0.0
        %723 = vmatpush2.msra.mxu0 0.0
        %724 = vmatprep.subr.mxu0 0.0
        %725 = vmatpush2.msra.mxu0 0.0
        %726 = vmatprep.subr.mxu0 0.0
        %727 = vmatpush2.msra.mxu0 0.0
        %728 = vmatprep.subr.mxu0 0.0
        %729 = vmatpush2.msra.mxu0 0.0
        %730 = vmatprep.subr.mxu0 0.0
        %731 = vmatpush2.msra.mxu0 0.0
        %732 = vmatprep.subr.mxu0 0.0
        %733 = vmatpush2.msra.mxu0 0.0
        %734 = vmatprep.subr.mxu0 0.0
        %735 = vmatpush2.msra.mxu0 0.0
        %736 = vmatprep.subr.mxu0 0.0
        %737 = vmatpush2.msra.mxu0 0.0
        %738 = vmatprep.subr.mxu0 0.0
        %739 = vmatpush2.msra.mxu0 0.0
        %740 = vmatprep.subr.mxu0 0.0
        %741 = vmatpush2.msra.mxu0 0.0
        %742 = vmatprep.subr.mxu0 0.0
        %743 = vmatpush2.msra.mxu0 0.0
        %744 = vmatprep.mubr.f32.mxu0 0.0
        %745 = vmatmul.mubr.f32.gmra.mxu0 %v604
        %v746 = vpop.f32.mrf.mxu0
        %v747 = vadd.f32 0.0, %v746
        %v748 = vpop.f32.mrf.mxu0
        %749 = vdwg.mxu0
        %v750 = vmul.f32 %v596, 0.35355338
        %vm751 = vcmask 64512
        %v753 = vsel %vm751, %v750, 0
        %v756 = vsel %vm751, %v673, 0
        %758 = vmatprep.subr.mxu0 0.0
        %759 = vmatpush1.xpose.msra.mxu0 0.0
        %760 = vmatprep.subr.mxu0 0.0
        %761 = vmatpush1.xpose.msra.mxu0 0.0
        %762 = vmatprep.subr.mxu0 0.0
        %763 = vmatpush1.xpose.msra.mxu0 0.0
        %764 = vmatprep.subr.mxu0 0.0
        %765 = vmatpush1.xpose.msra.mxu0 0.0
        %766 = vmatprep.subr.mxu0 0.0
        %767 = vmatpush1.xpose.msra.mxu0 0.0
        %768 = vmatprep.subr.mxu0 0.0
        %769 = vmatpush1.xpose.msra.mxu0 0.0
        %770 = vmatprep.subr.mxu0 0.0
        %771 = vmatpush1.xpose.msra.mxu0 0.0
        %772 = vmatprep.subr.mxu0 0.0
        %773 = vmatpush1.xpose.msra.mxu0 0.0
        %774 = vmatprep.subr.mxu0 0.0
        %775 = vmatpush1.xpose.msra.mxu0 0.0
        %776 = vmatprep.subr.mxu0 0.0
        %777 = vmatpush1.xpose.msra.mxu0 0.0
        %778 = vmatprep.subr.mxu0 0.0
        %779 = vmatpush1.xpose.msra.mxu0 0.0
        %780 = vmatprep.subr.mxu0 0.0
        %781 = vmatpush1.xpose.msra.mxu0 0.0
        %782 = vmatprep.subr.mxu0 0.0
        %783 = vmatpush1.xpose.msra.mxu0 0.0
        %784 = vmatprep.subr.mxu0 0.0
        %785 = vmatpush1.xpose.msra.mxu0 0.0
        %786 = vmatprep.subr.mxu0 0.0
        %787 = vmatpush1.xpose.msra.mxu0 0.0
        %788 = vmatprep.subr.mxu0 0.0
        %789 = vmatpush1.xpose.msra.mxu0 %v756
        %790 = vmatprep.subr.mxu0 0.0
        %791 = vmatpush2.xpose.msra.mxu0 0.0
        %792 = vmatprep.subr.mxu0 0.0
        %793 = vmatpush2.xpose.msra.mxu0 0.0
        %794 = vmatprep.subr.mxu0 0.0
        %795 = vmatpush2.xpose.msra.mxu0 0.0
        %796 = vmatprep.subr.mxu0 0.0
        %797 = vmatpush2.xpose.msra.mxu0 0.0
        %798 = vmatprep.subr.mxu0 0.0
        %799 = vmatpush2.xpose.msra.mxu0 0.0
        %800 = vmatprep.subr.mxu0 0.0
        %801 = vmatpush2.xpose.msra.mxu0 0.0
        %802 = vmatprep.subr.mxu0 0.0
        %803 = vmatpush2.xpose.msra.mxu0 0.0
        %804 = vmatprep.subr.mxu0 0.0
        %805 = vmatpush2.xpose.msra.mxu0 0.0
        %806 = vmatprep.subr.mxu0 0.0
        %807 = vmatpush2.xpose.msra.mxu0 0.0
        %808 = vmatprep.subr.mxu0 0.0
        %809 = vmatpush2.xpose.msra.mxu0 0.0
        %810 = vmatprep.subr.mxu0 0.0
        %811 = vmatpush2.xpose.msra.mxu0 0.0
        %812 = vmatprep.subr.mxu0 0.0
        %813 = vmatpush2.xpose.msra.mxu0 0.0
        %814 = vmatprep.subr.mxu0 0.0
        %815 = vmatpush2.xpose.msra.mxu0 0.0
        %816 = vmatprep.subr.mxu0 0.0
        %817 = vmatpush2.xpose.msra.mxu0 0.0
        %818 = vmatprep.subr.mxu0 0.0
        %819 = vmatpush2.xpose.msra.mxu0 0.0
        %820 = vmatprep.subr.mxu0 0.0
        %821 = vmatpush2.xpose.msra.mxu0 0.0
        %822 = vmatprep.mubr.f32.mxu0 0.0
        %823 = vmatmul.mubr.f32.gmra.mxu0 %v753
        %v824 = vpop.f32.mrf.mxu0
        %v825 = vadd.f32 0.0, %v824
        %v826 = vpop.f32.mrf.mxu0
        %827 = vdwg.mxu0
        %v828 = vld [vmem:[%s493] sm:$0xff]
        %vm829 = vcmp.eq.f32.partialorder %v828, 0.0
        %v830 = vsel %vm829, -1e+09, %v825
        %v831 = vsel %vm751, %v830, -inf
        %832 = vmax.xlane.f32.xlu0 %v831
        %v833 = vpop.xlane.xlu0 %832
        %v834 = vsub.f32 %v830, %v833
        %v835 = vmul.f32 %v834, 1.442695
        %v836 = vpow.pop %v835
        %v837 = vsel %vm751, %v836, 0.0
        %838 = vadd.xlane.f32.xlu0 %v837
        %v839 = vpop.xlane.xlu0 %838
        %v840 = vrcp.pop %v839
        %v841 = vmul.f32 %v836, %v840
        %842 = vst.msk [vmem:[%s478] sm:$0xff] %vm751, %v841
        %v844 = vsel %vm751, %v841, 0
        %846 = vmatprep.subr.mxu0 0.0
        %847 = vmatpush1.msra.mxu0 0.0
        %848 = vmatprep.subr.mxu0 0.0
        %849 = vmatpush1.msra.mxu0 0.0
        %850 = vmatprep.subr.mxu0 0.0
        %851 = vmatpush1.msra.mxu0 0.0
        %852 = vmatprep.subr.mxu0 0.0
        %853 = vmatpush1.msra.mxu0 0.0
        %854 = vmatprep.subr.mxu0 0.0
        %855 = vmatpush1.msra.mxu0 0.0
        %856 = vmatprep.subr.mxu0 0.0
        %857 = vmatpush1.msra.mxu0 0.0
        %858 = vmatprep.subr.mxu0 0.0
        %859 = vmatpush1.msra.mxu0 0.0
        %860 = vmatprep.subr.mxu0 0.0
        %861 = vmatpush1.msra.mxu0 0.0
        %862 = vmatprep.subr.mxu0 0.0
        %863 = vmatpush1.msra.mxu0 0.0
        %864 = vmatprep.subr.mxu0 0.0
        %865 = vmatpush1.msra.mxu0 0.0
        %866 = vmatprep.subr.mxu0 0.0
        %867 = vmatpush1.msra.mxu0 0.0
        %868 = vmatprep.subr.mxu0 0.0
        %869 = vmatpush1.msra.mxu0 0.0
        %870 = vmatprep.subr.mxu0 0.0
        %871 = vmatpush1.msra.mxu0 0.0
        %872 = vmatprep.subr.mxu0 0.0
        %873 = vmatpush1.msra.mxu0 0.0
        %874 = vmatprep.subr.mxu0 0.0
        %875 = vmatpush1.msra.mxu0 0.0
        %876 = vmatprep.subr.mxu0 0.0
        %877 = vmatpush1.msra.mxu0 %v747
        %878 = vmatprep.subr.mxu0 0.0
        %879 = vmatpush2.msra.mxu0 0.0
        %880 = vmatprep.subr.mxu0 0.0
        %881 = vmatpush2.msra.mxu0 0.0
        %882 = vmatprep.subr.mxu0 0.0
        %883 = vmatpush2.msra.mxu0 0.0
        %884 = vmatprep.subr.mxu0 0.0
        %885 = vmatpush2.msra.mxu0 0.0
        %886 = vmatprep.subr.mxu0 0.0
        %887 = vmatpush2.msra.mxu0 0.0
        %888 = vmatprep.subr.mxu0 0.0
        %889 = vmatpush2.msra.mxu0 0.0
        %890 = vmatprep.subr.mxu0 0.0
        %891 = vmatpush2.msra.mxu0 0.0
        %892 = vmatprep.subr.mxu0 0.0
        %893 = vmatpush2.msra.mxu0 0.0
        %894 = vmatprep.subr.mxu0 0.0
        %895 = vmatpush2.msra.mxu0 0.0
        %896 = vmatprep.subr.mxu0 0.0
        %897 = vmatpush2.msra.mxu0 0.0
        %898 = vmatprep.subr.mxu0 0.0
        %899 = vmatpush2.msra.mxu0 0.0
        %900 = vmatprep.subr.mxu0 0.0
        %901 = vmatpush2.msra.mxu0 0.0
        %902 = vmatprep.subr.mxu0 0.0
        %903 = vmatpush2.msra.mxu0 0.0
        %904 = vmatprep.subr.mxu0 0.0
        %905 = vmatpush2.msra.mxu0 0.0
        %906 = vmatprep.subr.mxu0 0.0
        %907 = vmatpush2.msra.mxu0 0.0
        %908 = vmatprep.subr.mxu0 0.0
        %909 = vmatpush2.msra.mxu0 0.0
        %910 = vmatprep.mubr.f32.mxu0 0.0
        %911 = vmatmul.mubr.f32.gmra.mxu0 %v844
        %v912 = vpop.f32.mrf.mxu0
        %v913 = vadd.f32 0.0, %v912
        %v914 = vpop.f32.mrf.mxu0
        %915 = vdwg.mxu0
        %v916 = vld [vmem:[#allocation2] sm:$0xff]
        %v917 = vld [vmem:[%s512] sm:$0xff]
        %v919 = vsel %vm751, %v913, 0
        %921 = vmatprep.subr.mxu0 0.0
        %922 = vmatpush1.msra.mxu0 0.0
        %923 = vmatprep.subr.mxu0 0.0
        %924 = vmatpush1.msra.mxu0 0.0
        %925 = vmatprep.subr.mxu0 0.0
        %926 = vmatpush1.msra.mxu0 0.0
        %927 = vmatprep.subr.mxu0 0.0
        %928 = vmatpush1.msra.mxu0 0.0
        %929 = vmatprep.subr.mxu0 0.0
        %930 = vmatpush1.msra.mxu0 0.0
        %931 = vmatprep.subr.mxu0 0.0
        %932 = vmatpush1.msra.mxu0 0.0
        %933 = vmatprep.subr.mxu0 0.0
        %934 = vmatpush1.msra.mxu0 0.0
        %935 = vmatprep.subr.mxu0 0.0
        %936 = vmatpush1.msra.mxu0 0.0
        %937 = vmatprep.subr.mxu0 0.0
        %938 = vmatpush1.msra.mxu0 0.0
        %939 = vmatprep.subr.mxu0 0.0
        %940 = vmatpush1.msra.mxu0 0.0
        %941 = vmatprep.subr.mxu0 0.0
        %942 = vmatpush1.msra.mxu0 0.0
        %943 = vmatprep.subr.mxu0 0.0
        %944 = vmatpush1.msra.mxu0 0.0
        %945 = vmatprep.subr.mxu0 0.0
        %946 = vmatpush1.msra.mxu0 0.0
        %947 = vmatprep.subr.mxu0 0.0
        %948 = vmatpush1.msra.mxu0 0.0
        %949 = vmatprep.subr.mxu0 0.0
        %950 = vmatpush1.msra.mxu0 0.0
        %951 = vmatprep.subr.mxu0 0.0
        %952 = vmatpush1.msra.mxu0 %v917
        %953 = vmatprep.subr.mxu0 0.0
        %954 = vmatpush2.msra.mxu0 0.0
        %955 = vmatprep.subr.mxu0 0.0
        %956 = vmatpush2.msra.mxu0 0.0
        %957 = vmatprep.subr.mxu0 0.0
        %958 = vmatpush2.msra.mxu0 0.0
        %959 = vmatprep.subr.mxu0 0.0
        %960 = vmatpush2.msra.mxu0 0.0
        %961 = vmatprep.subr.mxu0 0.0
        %962 = vmatpush2.msra.mxu0 0.0
        %963 = vmatprep.subr.mxu0 0.0
        %964 = vmatpush2.msra.mxu0 0.0
        %965 = vmatprep.subr.mxu0 0.0
        %966 = vmatpush2.msra.mxu0 0.0
        %967 = vmatprep.subr.mxu0 0.0
        %968 = vmatpush2.msra.mxu0 0.0
        %969 = vmatprep.subr.mxu0 0.0
        %970 = vmatpush2.msra.mxu0 0.0
        %971 = vmatprep.subr.mxu0 0.0
        %972 = vmatpush2.msra.mxu0 0.0
        %973 = vmatprep.subr.mxu0 0.0
        %974 = vmatpush2.msra.mxu0 0.0
        %975 = vmatprep.subr.mxu0 0.0
        %976 = vmatpush2.msra.mxu0 0.0
        %977 = vmatprep.subr.mxu0 0.0
        %978 = vmatpush2.msra.mxu0 0.0
        %979 = vmatprep.subr.mxu0 0.0
        %980 = vmatpush2.msra.mxu0 0.0
        %981 = vmatprep.subr.mxu0 0.0
        %982 = vmatpush2.msra.mxu0 0.0
        %983 = vmatprep.subr.mxu0 0.0
        %984 = vmatpush2.msra.mxu0 0.0
        %985 = vmatprep.mubr.f32.mxu0 0.0
        %986 = vmatmul.mubr.f32.gmra.mxu0 %v919
        %v987 = vpop.f32.mrf.mxu0
        %v988 = vadd.f32 0.0, %v987
        %v989 = vpop.f32.mrf.mxu0
        %990 = vdwg.mxu0
        %v991 = vadd.f32 %v916, %v988
        %992 = vst.msk [vmem:[#allocation2] sm:$0xff] %vm525, %v991
        %p993 = scmp.eq.s32.totalorder %s35, 3
        // Predicated region
        $region61: #{tpu_custom_call.1} parent=55 // pred_check
          %p994 = pneg %p993
        $region62: #{tpu_custom_call.1} parent=55 // pred_check_branch
          %996 = sbr.rel (%p994) target = $region64
        $region63: #{tpu_custom_call.1} parent=55 // pred_region
          %v997 = vld [vmem:[#allocation2] sm:$0xff]
          %v998 = vld [vmem:[%s485] sm:$0xff]
          %v999 = vadd.f32 %v997, %v998
          %v1000 = vsel %vm525, %v999, 0.0
          %1001 = vadd.xlane.f32.xlu0 %v1000
          %v1002 = vpop.xlane.xlu0 %1001
          %v1003 = vrcp.pop 32.0
          %v1004 = vmul.f32 %v1002, %v1003
          %v1005 = vsub.f32 %v999, %v1004
          %v1006 = vmul.f32 %v1005, %v1005
          %v1007 = vsel %vm525, %v1006, 0.0
          %1008 = vadd.xlane.f32.xlu0 %v1007
          %v1009 = vpop.xlane.xlu0 %1008
          %v1010 = vmul.f32 %v1009, %v1003
          %v1011 = vadd.f32 %v1010, 1e-05
          %v1012 = vrsqrt.pop %v1011
          %v1013 = vmul.f32 %v1005, %v1012
          %v1014 = vld [vmem:[%s7] sm:$0x1]
          %v1016 = vlaneseq
          %v1017 = vshrl.u32 %v1016, 7
          %v1018 = vsub.s32 0, %v1017
          %v1019 = vrot.slane %v1014, %v1018
          %v1021 = vmul.f32 %v1013, %v1019
          %v1022 = vld [vmem:[%s8] sm:$0x1]
          %v1024 = vlaneseq
          %v1025 = vshrl.u32 %v1024, 7
          %v1026 = vsub.s32 0, %v1025
          %v1027 = vrot.slane %v1022, %v1026
          %v1029 = vadd.f32 %v1021, %v1027
          %1030 = vst.msk [vmem:[%s471] sm:$0xff] %vm525, %v1029
        $region64: #{tpu_custom_call.1} parent=55 // pred_fallthru
          _
        %s1031 = sand.u32 %s283, 1
        %s1032 = scalar_lea.sflag [#allocation4], %s1031
        %s1033 = sand.u32 %s283, 1
        %s1034 = smul.addr %s1033, 8
        %s1035 = scalar_lea.vmem [#allocation3], %s1034
        %s1036 = sand.u32 %s313, 1
        %s1037 = scalar_lea.sflag [#allocation6], %s1036
        %s1038 = sand.u32 %s313, 1
        %s1039 = smul.addr %s1038, 8
        %s1040 = scalar_lea.vmem [#allocation5], %s1039
        // Predicated region
        $region65: #{tpu_custom_call.1} parent=55 // pred_check
          %p1041 = pneg %p293
        $region66: #{tpu_custom_call.1} parent=55 // pred_check_branch
          %1043 = sbr.rel (%p1041) target = $region68
        $region67: #{tpu_custom_call.1} parent=55 // pred_region
          %s1045 = ssub.s32 128, 128
          %1046 = vsyncadd %s1032, %s1045
          %s1047 = sadd.s32 %s34, %s33
          %s1048 = smul.addr %s1047, 128
          %s1049 = scalar_lea.hbm %s9, %s1048
          %s1051 = sshll.u32 %s1035, 4
          %s1052 = int_to_ptr.vmem [resolvable:$true] %s1051
          %1054 = dma.vmem_to_hbm [thread:$0]  %s1052, 128, %s1049, %s1032
        $region68: #{tpu_custom_call.1} parent=55 // pred_fallthru
          _
        // Predicated region
        $region69: #{tpu_custom_call.1} parent=55 // pred_check
          %p1055 = pneg %p323
        $region70: #{tpu_custom_call.1} parent=55 // pred_check_branch
          %1057 = sbr.rel (%p1055) target = $region72
        $region71: #{tpu_custom_call.1} parent=55 // pred_region
          %s1059 = ssub.s32 128, 128
          %1060 = vsyncadd %s1037, %s1059
          %s1061 = sadd.s32 %s34, %s35
          %s1062 = smul.addr %s33, 4
          %s1063 = sadd.s32 %s1061, %s1062
          %s1064 = smul.addr %s1063, 128
          %s1065 = scalar_lea.hbm %s10, %s1064
          %s1067 = sshll.u32 %s1040, 4
          %s1068 = int_to_ptr.vmem [resolvable:$true] %s1067
          %1070 = dma.vmem_to_hbm [thread:$0]  %s1068, 128, %s1065, %s1037
        $region72: #{tpu_custom_call.1} parent=55 // pred_fallthru
          _
      $region56: #{tpu_custom_call.1} parent=5 // pred_fallthru
        _
      %p1071 = scmp.le.s32.totalorder 2, %s23
      // Predicated region
      $region73: #{tpu_custom_call.1} parent=5 // pred_check
        %p1072 = pneg %p1071
      $region74: #{tpu_custom_call.1} parent=5 // pred_check_branch
        %1074 = sbr.rel (%p1072) target = $region76
      $region75: #{tpu_custom_call.1} parent=5 // pred_region
        %s1075 = ssub.s32 %s23, 2
        // Predicated region
        $region77: #{tpu_custom_call.1} parent=75 // pred_check
          %p1076 = pneg %p299
        $region78: #{tpu_custom_call.1} parent=75 // pred_check_branch
          %1078 = sbr.rel (%p1076) target = $region80
        $region79: #{tpu_custom_call.1} parent=75 // pred_region
          %s1079 = sand.u32 %s284, 1
          %s1080 = scalar_lea.sflag [#allocation4], %s1079
          %s1081 = sand.u32 %s284, 1
          %s1082 = smul.addr %s1081, 8
          %s1083 = scalar_lea.vmem [#allocation3], %s1082
          %1084 = dma.done %s1080, 128
        $region80: #{tpu_custom_call.1} parent=75 // pred_fallthru
          _
        // Predicated region
        $region81: #{tpu_custom_call.1} parent=75 // pred_check
          %p1085 = pneg %p329
        $region82: #{tpu_custom_call.1} parent=75 // pred_check_branch
          %1087 = sbr.rel (%p1085) target = $region84
        $region83: #{tpu_custom_call.1} parent=75 // pred_region
          %s1088 = sand.u32 %s314, 1
          %s1089 = scalar_lea.sflag [#allocation6], %s1088
          %s1090 = sand.u32 %s314, 1
          %s1091 = smul.addr %s1090, 8
          %s1092 = scalar_lea.vmem [#allocation5], %s1091
          %1093 = dma.done %s1089, 128
        $region84: #{tpu_custom_call.1} parent=75 // pred_fallthru
          _
      $region76: #{tpu_custom_call.1} parent=5 // pred_fallthru
        _
    $region6: #{tpu_custom_call.1} parent=1 // loop_footer
      %s27 = sadd.s32 1, %s23
    $region7: #{tpu_custom_call.1} parent=1 // loop_footer_branch
      %22 = sbr.rel target = $region3
    $region8: #{tpu_custom_call.1} parent=1 // loop_exit
      _
    %1094 = vsyncpa [#allocation4], 1
    %s1095 = scalar_lea.sflag [#allocation4], 1
    %1096 = vsyncpa %s1095, 1
    %1097 = vsyncpa [#allocation6], 1
    %s1098 = scalar_lea.sflag [#allocation6], 1
    %1099 = vsyncpa %s1098, 1

</llo_original>
